<compile_context>
chip_gen: v6e
topology: v6e:2x2x1
jax: 0.10.0
libtpu: 0.0.40
codegen_flags: <defaults>
</compile_context>

<pallas_src>
import functools

import jax
import jax.numpy as jnp
from jax.experimental import pallas as pl
from jax.experimental.pallas import tpu as pltpu


# --------------------------------------------------------------------------
# Kernel 1: fused ReLU + (depthwise ∘ pointwise) conv as a single im2col
#           matmul + fused BN partial statistics.  One image per grid step.
# --------------------------------------------------------------------------
def _sepconv_kernel(x_ref, wf_ref, bf_ref, y_ref, s_ref, ss_ref, xp_ref, *,
                    K, S, P, H_out, W_out):
    # x_ref : (1, H, W, C_in)        unpadded NHWC image
    # wf_ref: (C_out, K*K*C_in)      folded (depthwise*pointwise) weight
    # bf_ref: (C_out, 1)             folded bias
    # y_ref : (1, C_out, H_out*W_out)  channels-major (== NCHW flattened)
    # s_ref, ss_ref: (1, C_out, 1)   per-image channel sum / sum-of-squares
    # xp_ref: (Hp, Wp, C_in)         VMEM scratch for the padded image
    _, H, W, C_in = x_ref.shape

    # ReLU + zero-padding in VMEM (ReLU(pad(x)) == pad(ReLU(x)) since pad value is 0).
    xp_ref[...] = jnp.zeros_like(xp_ref)
    xp_ref[P:P + H, P:P + W, :] = jnp.maximum(x_ref[0], 0.0)
    xp = xp_ref[...]

    # im2col patches; contraction axis ordered (kh, kw, c_in) to match wf_ref.
    cols = []
    for kh in range(K):
        for kw in range(K):
            cols.append(xp[kh:kh + S * (H_out - 1) + 1:S,
                           kw:kw + S * (W_out - 1) + 1:S, :])
    patches = jnp.concatenate(cols, axis=-1)                    # (H_out, W_out, K*K*C_in)
    patches = patches.reshape(H_out * W_out, K * K * C_in)
    patches = patches.astype(wf_ref.dtype)                      # bf16 on v6e/v7x option

    # Single fused depthwise+pointwise matmul on the MXU, produced directly in
    # channels-major layout (NT dot_general — same pattern as q @ k.T).
    yt = jax.lax.dot_general(
        wf_ref[...], patches,
        dimension_numbers=(((1,), (1,)), ((), ())),
        preferred_element_type=jnp.float32)                     # (C_out, H_out*W_out)
    yt = yt + bf_ref[...]                                       # folded bias, f32

    # Fused BatchNorm partial statistics (per image, per channel), kept in f32.
    s_ref[0] = jnp.sum(yt, axis=1, keepdims=True)
    ss_ref[0] = jnp.sum(yt * yt, axis=1, keepdims=True)

    # Lane-dense store (last dim H_out*W_out is a multiple of 128 here).
    y_ref[0] = yt.astype(y_ref.dtype)


# --------------------------------------------------------------------------
# Kernel 2: BatchNorm apply (scale & shift), tiled over (image, H*W tiles).
# --------------------------------------------------------------------------
def _bn_apply_kernel(y_ref, scale_ref, shift_ref, o_ref):
    # y_ref: (1, C_out, TM), scale/shift: (C_out, 1)
    o_ref[...] = y_ref[...].astype(jnp.float32) * scale_ref[...] + shift_ref[...]


def _pick_hw_tile(hw, n_imgs):
    """Lane-aligned tile of the flattened H*W axis for the BN apply pass."""
    candidates = [t for t in (2048, 1024, 512, 256, 128) if hw % t == 0]
    if not candidates:
        return hw                       # full extent is still a legal block
    for t in candidates:                # biggest tile that still yields >= 4 grid
        if n_imgs * (hw // t) >= 4:     # steps (keeps both v7x TensorCores busy)
            return t
    return candidates[-1]


# --------------------------------------------------------------------------
# Wrapper
# --------------------------------------------------------------------------
def sepconv_forward(x_nchw, wd, bd, wp, bp, gamma, beta, *, stride, padding,
                    eps=1e-5, compute_dtype=jnp.float32):
    N, C_in, H, W = x_nchw.shape
    K = wd.shape[-1]
    C_out = wp.shape[0]
    Hp, Wp = H + 2 * padding, W + 2 * padding
    H_out = (Hp - K) // stride + 1
    W_out = (Wp - K) // stride + 1
    HW = H_out * W_out
    KKC = K * K * C_in

    # Entry relayout to channels-last (single small XLA op; see TODO at top).
    x_nhwc = jnp.transpose(x_nchw, (0, 2, 3, 1))

    # Fold depthwise + pointwise into one weight/bias (tiny one-time param ops).
    wd_hwc = jnp.transpose(wd[:, 0, :, :], (1, 2, 0))            # (K, K, C_in)
    wp2 = wp[:, :, 0, 0]                                         # (C_out, C_in)
    wf_t = (wd_hwc.reshape(1, K * K, C_in)
            * wp2.reshape(C_out, 1, C_in)).reshape(C_out, KKC).astype(compute_dtype)
    bf_t = (wp2 @ bd + bp).reshape(C_out, 1).astype(jnp.float32)

    conv_kernel = functools.partial(_sepconv_kernel, K=K, S=stride, P=padding,
                                    H_out=H_out, W_out=W_out)
    y, s_part, ss_part = pl.pallas_call(
        conv_kernel,
        out_shape=(
            jax.ShapeDtypeStruct((N, C_out, HW), compute_dtype),
            jax.ShapeDtypeStruct((N, C_out, 1), jnp.float32),
            jax.ShapeDtypeStruct((N, C_out, 1), jnp.float32),
        ),
        grid=(N,),
        in_specs=[
            pl.BlockSpec((1, H, W, C_in), lambda n: (n, 0, 0, 0)),
            pl.BlockSpec((C_out, KKC), lambda n: (0, 0)),
            pl.BlockSpec((C_out, 1), lambda n: (0, 0)),
        ],
        out_specs=(
            pl.BlockSpec((1, C_out, HW), lambda n: (n, 0, 0)),
            pl.BlockSpec((1, C_out, 1), lambda n: (n, 0, 0)),
            pl.BlockSpec((1, C_out, 1), lambda n: (n, 0, 0)),
        ),
        scratch_shapes=[pltpu.VMEM((Hp, Wp, C_in), jnp.float32)],
        compiler_params=pltpu.CompilerParams(dimension_semantics=("parallel",)),
    )(x_nhwc, wf_t, bf_t)

    # Combine the fused per-image statistics into BN scale/shift (a few dozen
    # scalars, f32).  Biased variance == PyTorch training-mode BN.
    # (For very large N*H*W, switch to a shifted-mean formulation to avoid
    #  E[x^2]-E[x]^2 cancellation.)
    cnt = jnp.float32(N * HW)
    mean = jnp.sum(s_part, axis=0) / cnt                         # (C_out, 1)
    var = jnp.sum(ss_part, axis=0) / cnt - mean * mean
    inv = jax.lax.rsqrt(var + eps)
    scale = gamma.reshape(C_out, 1).astype(jnp.float32) * inv
    shift = beta.reshape(C_out, 1).astype(jnp.float32) - mean * scale

    # Tiled, lane-dense normalize pass (reads y exactly once).
    TM = _pick_hw_tile(HW, N)
    out_flat = pl.pallas_call(
        _bn_apply_kernel,
        out_shape=jax.ShapeDtypeStruct((N, C_out, HW), jnp.float32),
        grid=(N, HW // TM),
        in_specs=[
            pl.BlockSpec((1, C_out, TM), lambda n, m: (n, 0, m)),
            pl.BlockSpec((C_out, 1), lambda n, m: (0, 0)),
            pl.BlockSpec((C_out, 1), lambda n, m: (0, 0)),
        ],
        out_specs=pl.BlockSpec((1, C_out, TM), lambda n, m: (n, 0, m)),
        compiler_params=pltpu.CompilerParams(
            dimension_semantics=("parallel", "parallel")),
    )(y, scale, shift)

    # (N, C_out, H_out*W_out) is already channels-major: a free reshape gives NCHW.
    return out_flat.reshape(N, C_out, H_out, W_out)


# --------------------------------------------------------------------------
# Pure-JAX reference (mirrors the PyTorch forward, training-mode BN).
# --------------------------------------------------------------------------
def ref_forward(x, wd, bd, wp, bp, gamma, beta, *, stride, padding, eps=1e-5):
    h = jax.nn.relu(x)
    h = jax.lax.conv_general_dilated(
        h, wd, (stride, stride), [(padding, padding)] * 2,
        dimension_numbers=('NCHW', 'OIHW', 'NCHW'),
        feature_group_count=x.shape[1])
    h = h + bd.reshape(1, -1, 1, 1)
    h = jax.lax.conv_general_dilated(
        h, wp, (1, 1), [(0, 0), (0, 0)],
        dimension_numbers=('NCHW', 'OIHW', 'NCHW'))
    h = h + bp.reshape(1, -1, 1, 1)
    mean = jnp.mean(h, axis=(0, 2, 3), keepdims=True)
    var = jnp.mean((h - mean) ** 2, axis=(0, 2, 3), keepdims=True)
    h = (h - mean) * jax.lax.rsqrt(var + eps)
    return h * gamma.reshape(1, -1, 1, 1) + beta.reshape(1, -1, 1, 1)


if __name__ == "__main__":
    # Shapes consistent with SepConv(C_in=4, C_out=8, k=3, stride=1, pad=1).
    N, C_in, C_out, H, W = 2, 4, 8, 16, 16
    K, stride, padding = 3, 1, 1

    key = jax.random.PRNGKey(0)
    k1, k2, k3, k4, k5, k6, k7 = jax.random.split(key, 7)

    x = jax.random.normal(k1, (N, C_in, H, W), jnp.float32)
    # dep_conv: Conv2d(C_in, C_in, K, groups=C_in) -> weight (C_in, 1, K, K)
    wd = jax.random.normal(k2, (C_in, 1, K, K), jnp.float32) * 0.1
    bd = jax.random.normal(k3, (C_in,), jnp.float32) * 0.1
    # point_conv: Conv2d(C_in, C_out, 1) -> weight (C_out, C_in, 1, 1)
    wp = jax.random.normal(k4, (C_out, C_in, 1, 1), jnp.float32) * 0.1
    bp = jax.random.normal(k5, (C_out,), jnp.float32) * 0.1
    # BatchNorm2d affine params (nontrivial values to exercise the affine path).
    gamma = 1.0 + 0.1 * jax.random.normal(k6, (C_out,), jnp.float32)
    beta = 0.1 * jax.random.normal(k7, (C_out,), jnp.float32)

    ref = ref_forward(x, wd, bd, wp, bp, gamma, beta,
                      stride=stride, padding=padding)

    # f32 path (exact semantics, tight tolerance).
    fwd = jax.jit(functools.partial(sepconv_forward, stride=stride,
                                    padding=padding))
    out = jax.block_until_ready(fwd(x, wd, bd, wp, bp, gamma, beta))
    assert out.shape == (N, C_out, H, W)
    assert jnp.allclose(out, ref, atol=1e-3, rtol=1e-3), "f32 mismatch vs reference"

    # bf16-operand path (recommended on v6e/v7x: halves matmul/DMA bytes).
    fwd_bf16 = jax.jit(functools.partial(sepconv_forward, stride=stride,
                                         padding=padding,
                                         compute_dtype=jnp.bfloat16))
    out_bf16 = jax.block_until_ready(fwd_bf16(x, wd, bd, wp, bp, gamma, beta))
    assert jnp.allclose(out_bf16, ref, atol=1e-1, rtol=1e-1), "bf16 mismatch vs reference"

    print("KERNEL_OK")
</pallas_src>

<mosaic_0001>
module attributes {stable_mosaic.version = 11 : i64} {
  func.func @_bn_apply_kernel(%arg0: i32, %arg1: i32, %arg2: memref<1x8x128xf32, #tpu.memory_space<vmem>>, %arg3: memref<8x1xf32, #tpu.memory_space<vmem>>, %arg4: memref<8x1xf32, #tpu.memory_space<vmem>>, %arg5: memref<1x8x128xf32, #tpu.memory_space<vmem>>) attributes {dimension_semantics = [#tpu.dimension_semantics<parallel>, #tpu.dimension_semantics<parallel>], iteration_bounds = array<i64: 2, 2>, scalar_prefetch = 0 : i64, scratch_operands = 0 : i64, tpu.core_type = #tpu.core_type<tc>, window_params = [{transform_indices = @transform_0, window_bounds = array<i64: 1, 8, 128>}, {pipeline_mode = #tpu.pipeline_mode<synchronous>, transform_indices = @transform_1, window_bounds = array<i64: 8, 1>}, {pipeline_mode = #tpu.pipeline_mode<synchronous>, transform_indices = @transform_2, window_bounds = array<i64: 8, 1>}, {transform_indices = @transform_3, window_bounds = array<i64: 1, 8, 128>}]} {
    %c0 = arith.constant 0 : index
    %c0_0 = arith.constant 0 : index
    %c0_1 = arith.constant 0 : index
    %0 = vector.load %arg2[%c0, %c0_0, %c0_1] : memref<1x8x128xf32, #tpu.memory_space<vmem>>, vector<1x8x128xf32>
    %c0_2 = arith.constant 0 : index
    %c0_3 = arith.constant 0 : index
    %1 = vector.load %arg3[%c0_2, %c0_3] : memref<8x1xf32, #tpu.memory_space<vmem>>, vector<8x1xf32>
    %2 = vector.shape_cast %1 : vector<8x1xf32> to vector<1x8x1xf32>
    %3 = vector.broadcast %2 : vector<1x8x1xf32> to vector<1x8x128xf32>
    %4 = arith.mulf %0, %3 : vector<1x8x128xf32>
    %c0_4 = arith.constant 0 : index
    %c0_5 = arith.constant 0 : index
    %5 = vector.load %arg4[%c0_4, %c0_5] : memref<8x1xf32, #tpu.memory_space<vmem>>, vector<8x1xf32>
    %6 = vector.shape_cast %5 : vector<8x1xf32> to vector<1x8x1xf32>
    %7 = vector.broadcast %6 : vector<1x8x1xf32> to vector<1x8x128xf32>
    %8 = arith.addf %4, %7 : vector<1x8x128xf32>
    %c0_6 = arith.constant 0 : index
    %c0_7 = arith.constant 0 : index
    %c0_8 = arith.constant 0 : index
    %9 = vector.load %arg5[%c0_6, %c0_7, %c0_8] : memref<1x8x128xf32, #tpu.memory_space<vmem>>, vector<1x8x128xf32>
    tpu.vector_store %arg5[%c0_6, %c0_7, %c0_8], %8 {strides = array<i32>} : memref<1x8x128xf32, #tpu.memory_space<vmem>>, vector<1x8x128xf32>,
    return
  }
  func.func @transform_0(%arg0: i32, %arg1: i32) -> (i32, i32, i32) {
    %c0_i32 = arith.constant 0 : i32
    %c0_i32_0 = arith.constant 0 : i32
    return %arg0, %c0_i32, %arg1 : i32, i32, i32
  }
  func.func @transform_1(%arg0: i32, %arg1: i32) -> (i32, i32) {
    %c0_i32 = arith.constant 0 : i32
    %c0_i32_0 = arith.constant 0 : i32
    %c0_i32_1 = arith.constant 0 : i32
    return %c0_i32, %c0_i32_0 : i32, i32
  }
  func.func @transform_2(%arg0: i32, %arg1: i32) -> (i32, i32) {
    %c0_i32 = arith.constant 0 : i32
    %c0_i32_0 = arith.constant 0 : i32
    %c0_i32_1 = arith.constant 0 : i32
    return %c0_i32, %c0_i32_0 : i32, i32
  }
  func.func @transform_3(%arg0: i32, %arg1: i32) -> (i32, i32, i32) {
    %c0_i32 = arith.constant 0 : i32
    %c0_i32_0 = arith.constant 0 : i32
    return %arg0, %c0_i32, %arg1 : i32, i32, i32
  }
}

module attributes {stable_mosaic.version = 11 : i64} {
  func.func @_sepconv_kernel(%arg0: i32, %arg1: memref<1x16x16x4xf32, #tpu.memory_space<vmem>>, %arg2: memref<8x36xf32, #tpu.memory_space<vmem>>, %arg3: memref<8x1xf32, #tpu.memory_space<vmem>>, %arg4: memref<1x8x256xf32, #tpu.memory_space<vmem>>, %arg5: memref<1x8x1xf32, #tpu.memory_space<vmem>>, %arg6: memref<1x8x1xf32, #tpu.memory_space<vmem>>, %arg7: memref<18x18x4xf32, #tpu.memory_space<vmem>>) attributes {dimension_semantics = [#tpu.dimension_semantics<parallel>], iteration_bounds = array<i64: 2>, scalar_prefetch = 0 : i64, scratch_operands = 1 : i64, tpu.core_type = #tpu.core_type<tc>, window_params = [{transform_indices = @transform_0, window_bounds = array<i64: 1, 16, 16, 4>}, {pipeline_mode = #tpu.pipeline_mode<synchronous>, transform_indices = @transform_1, window_bounds = array<i64: 8, 36>}, {pipeline_mode = #tpu.pipeline_mode<synchronous>, transform_indices = @transform_2, window_bounds = array<i64: 8, 1>}, {transform_indices = @transform_3, window_bounds = array<i64: 1, 8, 256>}, {transform_indices = @transform_4, window_bounds = array<i64: 1, 8, 1>}, {transform_indices = @transform_5, window_bounds = array<i64: 1, 8, 1>}]} {
    %cst = arith.constant 0.000000e+00 : f32
    %0 = vector.broadcast %cst : f32 to vector<18x18x4xf32>
    %c0 = arith.constant 0 : index
    %c0_0 = arith.constant 0 : index
    %c0_1 = arith.constant 0 : index
    %1 = vector.load %arg7[%c0, %c0_0, %c0_1] : memref<18x18x4xf32, #tpu.memory_space<vmem>>, vector<18x18x4xf32>
    tpu.vector_store %arg7[%c0, %c0_0, %c0_1], %0 {strides = array<i32>} : memref<18x18x4xf32, #tpu.memory_space<vmem>>, vector<18x18x4xf32>,
    %c0_2 = arith.constant 0 : index
    %c0_3 = arith.constant 0 : index
    %c0_4 = arith.constant 0 : index
    %c0_5 = arith.constant 0 : index
    %2 = vector.load %arg1[%c0_2, %c0_3, %c0_4, %c0_5] : memref<1x16x16x4xf32, #tpu.memory_space<vmem>>, vector<1x16x16x4xf32>
    %3 = vector.shape_cast %2 : vector<1x16x16x4xf32> to vector<16x16x4xf32>
    %cst_6 = arith.constant 0.000000e+00 : f32
    %4 = vector.broadcast %cst_6 : f32 to vector<16x16x4xf32>
    %5 = arith.maximumf %3, %4 : vector<16x16x4xf32>
    %c1 = arith.constant 1 : index
    %c1_7 = arith.constant 1 : index
    %c0_8 = arith.constant 0 : index
    %6 = vector.load %arg7[%c1, %c1_7, %c0_8] : memref<18x18x4xf32, #tpu.memory_space<vmem>>, vector<16x16x4xf32>
    tpu.vector_store %arg7[%c1, %c1_7, %c0_8], %5 {strides = array<i32>} : memref<18x18x4xf32, #tpu.memory_space<vmem>>, vector<16x16x4xf32>,
    %c0_9 = arith.constant 0 : index
    %c0_10 = arith.constant 0 : index
    %c0_11 = arith.constant 0 : index
    %7 = vector.load %arg7[%c0_9, %c0_10, %c0_11] : memref<18x18x4xf32, #tpu.memory_space<vmem>>, vector<18x18x4xf32>
    %8 = vector.extract_strided_slice %7 {offsets = [0, 0, 0], sizes = [16, 16, 4], strides = [1, 1, 1]} : vector<18x18x4xf32> to vector<16x16x4xf32>
    %9 = vector.extract_strided_slice %7 {offsets = [0, 1, 0], sizes = [16, 16, 4], strides = [1, 1, 1]} : vector<18x18x4xf32> to vector<16x16x4xf32>
    %10 = vector.extract_strided_slice %7 {offsets = [0, 2, 0], sizes = [16, 16, 4], strides = [1, 1, 1]} : vector<18x18x4xf32> to vector<16x16x4xf32>
    %11 = vector.extract_strided_slice %7 {offsets = [1, 0, 0], sizes = [16, 16, 4], strides = [1, 1, 1]} : vector<18x18x4xf32> to vector<16x16x4xf32>
    %12 = vector.extract_strided_slice %7 {offsets = [1, 1, 0], sizes = [16, 16, 4], strides = [1, 1, 1]} : vector<18x18x4xf32> to vector<16x16x4xf32>
    %13 = vector.extract_strided_slice %7 {offsets = [1, 2, 0], sizes = [16, 16, 4], strides = [1, 1, 1]} : vector<18x18x4xf32> to vector<16x16x4xf32>
    %14 = vector.extract_strided_slice %7 {offsets = [2, 0, 0], sizes = [16, 16, 4], strides = [1, 1, 1]} : vector<18x18x4xf32> to vector<16x16x4xf32>
    %15 = vector.extract_strided_slice %7 {offsets = [2, 1, 0], sizes = [16, 16, 4], strides = [1, 1, 1]} : vector<18x18x4xf32> to vector<16x16x4xf32>
    %16 = vector.extract_strided_slice %7 {offsets = [2, 2, 0], sizes = [16, 16, 4], strides = [1, 1, 1]} : vector<18x18x4xf32> to vector<16x16x4xf32>
    %17 = tpu.concatenate %8, %9, %10, %11, %12, %13, %14, %15, %16 in 2 : vector<16x16x4xf32>, vector<16x16x4xf32>, vector<16x16x4xf32>, vector<16x16x4xf32>, vector<16x16x4xf32>, vector<16x16x4xf32>, vector<16x16x4xf32>, vector<16x16x4xf32>, vector<16x16x4xf32> -> vector<16x16x36xf32>
    %18 = vector.shape_cast %17 : vector<16x16x36xf32> to vector<256x36xf32>
    %c0_12 = arith.constant 0 : index
    %c0_13 = arith.constant 0 : index
    %19 = vector.load %arg2[%c0_12, %c0_13] : memref<8x36xf32, #tpu.memory_space<vmem>>, vector<8x36xf32>
    %cst_14 = arith.constant dense<0.000000e+00> : vector<8x256xf32>
    %20 = tpu.matmul %19, %18, %cst_14 {dimension_numbers = #tpu.dot_dimension_numbers<[1], [1], [0], [0], [0, 0, 1, 0], [], []>} : vector<8x36xf32>, vector<256x36xf32>, vector<8x256xf32> -> vector<8x256xf32>
    %c0_15 = arith.constant 0 : index
    %c0_16 = arith.constant 0 : index
    %21 = vector.load %arg3[%c0_15, %c0_16] : memref<8x1xf32, #tpu.memory_space<vmem>>, vector<8x1xf32>
    %22 = vector.broadcast %21 : vector<8x1xf32> to vector<8x256xf32>
    %23 = arith.addf %20, %22 : vector<8x256xf32>
    %cst_17 = arith.constant dense<0.000000e+00> : vector<8xf32>
    %24 = vector.multi_reduction <add>, %23, %cst_17 [1] : vector<8x256xf32> to vector<8xf32>
    %25 = vector.shape_cast %24 : vector<8xf32> to vector<8x1xf32>
    %c0_18 = arith.constant 0 : index
    %c0_19 = arith.constant 0 : index
    %c0_20 = arith.constant 0 : index
    %26 = vector.load %arg5[%c0_18, %c0_19, %c0_20] : memref<1x8x1xf32, #tpu.memory_space<vmem>>, vector<1x8x1xf32>
    %27 = vector.shape_cast %26 : vector<1x8x1xf32> to vector<8x1xf32>
    %28 = vector.shape_cast %25 : vector<8x1xf32> to vector<1x8x1xf32>
    tpu.vector_store %arg5[%c0_18, %c0_19, %c0_20], %28 {strides = array<i32>} : memref<1x8x1xf32, #tpu.memory_space<vmem>>, vector<1x8x1xf32>,
    %29 = arith.mulf %23, %23 : vector<8x256xf32>
    %cst_21 = arith.constant dense<0.000000e+00> : vector<8xf32>
    %30 = vector.multi_reduction <add>, %29, %cst_21 [1] : vector<8x256xf32> to vector<8xf32>
    %31 = vector.shape_cast %30 : vector<8xf32> to vector<8x1xf32>
    %c0_22 = arith.constant 0 : index
    %c0_23 = arith.constant 0 : index
    %c0_24 = arith.constant 0 : index
    %32 = vector.load %arg6[%c0_22, %c0_23, %c0_24] : memref<1x8x1xf32, #tpu.memory_space<vmem>>, vector<1x8x1xf32>
    %33 = vector.shape_cast %32 : vector<1x8x1xf32> to vector<8x1xf32>
    %34 = vector.shape_cast %31 : vector<8x1xf32> to vector<1x8x1xf32>
    tpu.vector_store %arg6[%c0_22, %c0_23, %c0_24], %34 {strides = array<i32>} : memref<1x8x1xf32, #tpu.memory_space<vmem>>, vector<1x8x1xf32>,
    %c0_25 = arith.constant 0 : index
    %c0_26 = arith.constant 0 : index
    %c0_27 = arith.constant 0 : index
    %35 = vector.load %arg4[%c0_25, %c0_26, %c0_27] : memref<1x8x256xf32, #tpu.memory_space<vmem>>, vector<1x8x256xf32>
    %36 = vector.shape_cast %35 : vector<1x8x256xf32> to vector<8x256xf32>
    %37 = vector.shape_cast %23 : vector<8x256xf32> to vector<1x8x256xf32>
    tpu.vector_store %arg4[%c0_25, %c0_26, %c0_27], %37 {strides = array<i32>} : memref<1x8x256xf32, #tpu.memory_space<vmem>>, vector<1x8x256xf32>,
    return
  }
  func.func @transform_0(%arg0: i32) -> (i32, i32, i32, i32) {
    %c0_i32 = arith.constant 0 : i32
    %c0_i32_0 = arith.constant 0 : i32
    %c0_i32_1 = arith.constant 0 : i32
    %c0_i32_2 = arith.constant 0 : i32
    return %arg0, %c0_i32, %c0_i32_0, %c0_i32_1 : i32, i32, i32, i32
  }
  func.func @transform_1(%arg0: i32) -> (i32, i32) {
    %c0_i32 = arith.constant 0 : i32
    %c0_i32_0 = arith.constant 0 : i32
    %c0_i32_1 = arith.constant 0 : i32
    return %c0_i32, %c0_i32_0 : i32, i32
  }
  func.func @transform_2(%arg0: i32) -> (i32, i32) {
    %c0_i32 = arith.constant 0 : i32
    %c0_i32_0 = arith.constant 0 : i32
    %c0_i32_1 = arith.constant 0 : i32
    return %c0_i32, %c0_i32_0 : i32, i32
  }
  func.func @transform_3(%arg0: i32) -> (i32, i32, i32) {
    %c0_i32 = arith.constant 0 : i32
    %c0_i32_0 = arith.constant 0 : i32
    %c0_i32_1 = arith.constant 0 : i32
    return %arg0, %c0_i32, %c0_i32_0 : i32, i32, i32
  }
  func.func @transform_4(%arg0: i32) -> (i32, i32, i32) {
    %c0_i32 = arith.constant 0 : i32
    %c0_i32_0 = arith.constant 0 : i32
    %c0_i32_1 = arith.constant 0 : i32
    return %arg0, %c0_i32, %c0_i32_0 : i32, i32, i32
  }
  func.func @transform_5(%arg0: i32) -> (i32, i32, i32) {
    %c0_i32 = arith.constant 0 : i32
    %c0_i32_0 = arith.constant 0 : i32
    %c0_i32_1 = arith.constant 0 : i32
    return %arg0, %c0_i32, %c0_i32_0 : i32, i32, i32
  }
}

</mosaic_0001>

<llo_original>
// kernel: sepconv_forward.3
$region0: #{sepconv_forward.3}
  #allocation0 [shape = 'u32[]', space=smem, size = 0x4, offset = 0x4, fixed_abs, tag = 'smem constant byte address 0x4 - core index']
  #allocation1 [shape = 'u32[144,128]{1,0:T(1,128)}', space=vmem, size = 0x12000, scoped, tag = 'internal scratch']
  %s0 = inlined_call_operand.vmem [shape: f32[2,8,256], index: 0, kind: input, shape index: {}]
  %s1 = inlined_call_operand.vmem [shape: f32[8,1], index: 1, kind: input, shape index: {}]
  %s2 = inlined_call_operand.vmem [shape: f32[8,1], index: 2, kind: input, shape index: {}]
  %s3 = inlined_call_operand.vmem [shape: f32[2,8,256], index: 3, kind: output, shape index: {}]
  %s4 = sld [smem:[#allocation0]]
  $region45: #{sepconv_forward.3} parent=0
    _
  %s6 = ssub.s32 1, %s4
  %s7 = scalar_select 0, %s6, %s4
  loop: start=0, step=1, limit=6
  $region2: #{sepconv_forward.3} parent=0 // loop_pre_header
    _
  $region3: #{sepconv_forward.3} parent=0 // loop_header
    %s9 = sphi 0, %s13
    %p10 = scmp.ge.s32.totalorder %s9, 6
    %s16 = sphi 0, %s28
    %s17 = sphi 0, %s24
    %s18 = sphi 0, %s16
    %s19 = sphi 0, %s17
    %s20 = sphi 0, %s18
    %s21 = sphi 0, %s19
    %s33 = sphi 0, %s35
    %s36 = sphi 0, %s33
    %s37 = sphi 0, %s36
    %s53 = sphi 0, %s37
    %s57 = sphi 0, %s57
    %s59 = sphi 0, %s57
    %s60 = sphi 0, %s59
    %s74 = sphi 0, %s60
    %s78 = sphi 0, %s78
    %s80 = sphi 0, %s78
    %s81 = sphi 0, %s80
    %s95 = sphi 0, %s81
    %s103 = sphi 0, %s105
    %s106 = sphi 0, %s103
    %s107 = sphi 0, %s106
    %s123 = sphi 0, %s107
  $region4: #{sepconv_forward.3} parent=0 // loop_header_branch
    %12 = sbr.rel (%p10) target = $region8
  $region5: #{sepconv_forward.3} parent=0 // loop_body
    %s14 = ssub.s32 %s9, 1
    %s15 = ssub.s32 %s9, 2
    %s22 = sadd.s32 1, %s17
    %p23 = scmp.ge.s32.totalorder %s22, 2
    %s24 = scalar_select %p23, 0, %s22
    %s25 = sadd.s32 1, %s16
    %s26 = scalar_select %p23, %s25, %s16
    %p27 = scmp.ge.s32.totalorder %s26, 2
    %s28 = scalar_select %p27, 0, %s26
    %s29 = ssub.s32 %s16, %s28
    %s30 = ssub.s32 %s17, %s24
    %s31 = sor.u32 %s29, %s30
    %p32 = scmp.eq.s32.totalorder %s31, 0
    %s34 = sadd.s32 %s33, 1
    %s35 = scalar_select %p32, %s33, %s34
    %p38 = pneg %p32
    %p39 = scmp.eq.s32.totalorder %s9, 3
    %p40 = por %p38, %p39
    %p41 = scmp.ne.s32.totalorder %s33, %s36
    %p42 = scmp.eq.s32.totalorder %s9, 0
    %p43 = por %p41, %p42
    %p44 = scmp.ne.s32.totalorder %s33, %s36
    %p45 = scmp.eq.s32.totalorder %s14, 3
    %p46 = por %p44, %p45
    %p47 = scmp.ne.s32.totalorder %s36, %s37
    %p48 = scmp.eq.s32.totalorder %s14, 0
    %p49 = por %p47, %p48
    %p50 = scmp.ne.s32.totalorder %s36, %s37
    %p51 = scmp.eq.s32.totalorder %s15, 3
    %p52 = por %p50, %p51
    %p54 = scmp.ne.s32.totalorder %s37, %s53
    %p55 = scmp.eq.s32.totalorder %s15, 0
    %p56 = por %p54, %p55
    %s58 = sadd.s32 %s57, 1
    %p61 = scmp.eq.s32.totalorder %s9, 3
    %p62 = scmp.ne.s32.totalorder %s57, %s59
    %p63 = scmp.eq.s32.totalorder %s9, 0
    %p64 = por %p62, %p63
    %p65 = scmp.ne.s32.totalorder %s57, %s59
    %p66 = scmp.eq.s32.totalorder %s14, 3
    %p67 = por %p65, %p66
    %p68 = scmp.ne.s32.totalorder %s59, %s60
    %p69 = scmp.eq.s32.totalorder %s14, 0
    %p70 = por %p68, %p69
    %p71 = scmp.ne.s32.totalorder %s59, %s60
    %p72 = scmp.eq.s32.totalorder %s15, 3
    %p73 = por %p71, %p72
    %p75 = scmp.ne.s32.totalorder %s60, %s74
    %p76 = scmp.eq.s32.totalorder %s15, 0
    %p77 = por %p75, %p76
    %s79 = sadd.s32 %s78, 1
    %p82 = scmp.eq.s32.totalorder %s9, 3
    %p83 = scmp.ne.s32.totalorder %s78, %s80
    %p84 = scmp.eq.s32.totalorder %s9, 0
    %p85 = por %p83, %p84
    %p86 = scmp.ne.s32.totalorder %s78, %s80
    %p87 = scmp.eq.s32.totalorder %s14, 3
    %p88 = por %p86, %p87
    %p89 = scmp.ne.s32.totalorder %s80, %s81
    %p90 = scmp.eq.s32.totalorder %s14, 0
    %p91 = por %p89, %p90
    %p92 = scmp.ne.s32.totalorder %s80, %s81
    %p93 = scmp.eq.s32.totalorder %s15, 3
    %p94 = por %p92, %p93
    %p96 = scmp.ne.s32.totalorder %s81, %s95
    %p97 = scmp.eq.s32.totalorder %s15, 0
    %p98 = por %p96, %p97
    %s99 = ssub.s32 %s16, %s28
    %s100 = ssub.s32 %s17, %s24
    %s101 = sor.u32 %s99, %s100
    %p102 = scmp.eq.s32.totalorder %s101, 0
    %s104 = sadd.s32 %s103, 1
    %s105 = scalar_select %p102, %s103, %s104
    %p108 = pneg %p102
    %p109 = scmp.eq.s32.totalorder %s9, 3
    %p110 = por %p108, %p109
    %p111 = scmp.ne.s32.totalorder %s103, %s106
    %p112 = scmp.eq.s32.totalorder %s9, 0
    %p113 = por %p111, %p112
    %p114 = scmp.ne.s32.totalorder %s103, %s106
    %p115 = scmp.eq.s32.totalorder %s14, 3
    %p116 = por %p114, %p115
    %p117 = scmp.ne.s32.totalorder %s106, %s107
    %p118 = scmp.eq.s32.totalorder %s14, 0
    %p119 = por %p117, %p118
    %p120 = scmp.ne.s32.totalorder %s106, %s107
    %p121 = scmp.eq.s32.totalorder %s15, 3
    %p122 = por %p120, %p121
    %p124 = scmp.ne.s32.totalorder %s107, %s123
    %p125 = scmp.eq.s32.totalorder %s15, 0
    %p126 = por %p124, %p125
    %p127 = scmp.le.s32.totalorder 1, %s9
    %p128 = scmp.lt.s32.totalorder %s9, 5
    %p129 = pnand %p127, %p128
    %p130 = pneg %p129
    // Predicated region
    $region9: #{sepconv_forward.3} parent=5 // pred_check
      _
    $region10: #{sepconv_forward.3} parent=5 // pred_check_branch
      %132 = sbr.rel (%p129) target = $region12
    $region11: #{sepconv_forward.3} parent=5 // pred_region
      %s133 = ssub.s32 %s9, 1
      // Predicated region
      $region13: #{sepconv_forward.3} parent=11 // pred_check
        %p134 = pneg %p70
      $region14: #{sepconv_forward.3} parent=11 // pred_check_branch
        %136 = sbr.rel (%p134) target = $region16
      $region15: #{sepconv_forward.3} parent=11 // pred_region
        _
      $region16: #{sepconv_forward.3} parent=11 // pred_fallthru
        _
      // Predicated region
      $region17: #{sepconv_forward.3} parent=11 // pred_check
        %p137 = pneg %p91
      $region18: #{sepconv_forward.3} parent=11 // pred_check_branch
        %139 = sbr.rel (%p137) target = $region20
      $region19: #{sepconv_forward.3} parent=11 // pred_region
        _
      $region20: #{sepconv_forward.3} parent=11 // pred_fallthru
        _
    $region12: #{sepconv_forward.3} parent=5 // pred_fallthru
      _
    %p140 = scmp.lt.s32.totalorder %s9, 4
    // Predicated region
    $region21: #{sepconv_forward.3} parent=5 // pred_check
      %p141 = pneg %p140
    $region22: #{sepconv_forward.3} parent=5 // pred_check_branch
      %143 = sbr.rel (%p141) target = $region24
    $region23: #{sepconv_forward.3} parent=5 // pred_region
      // Predicated region
      $region25: #{sepconv_forward.3} parent=23 // pred_check
        %p144 = pneg %p43
      $region26: #{sepconv_forward.3} parent=23 // pred_check_branch
        %146 = sbr.rel (%p144) target = $region28
      $region27: #{sepconv_forward.3} parent=23 // pred_region
        %p147 = scmp.lt.s32.totalorder %s16, 1
        %s148 = scalar_select %p147, %s16, 1
        %p149 = scmp.lt.s32.totalorder %s17, 1
        %s150 = scalar_select %p149, %s17, 1
        %s151 = smul.addr %s148, 2
        %s152 = sadd.s32 %s150, %s151
        %s153 = smul.addr %s152, 8
        %s154 = scalar_lea.vmem %s0, %s153
      $region28: #{sepconv_forward.3} parent=23 // pred_fallthru
        _
    $region24: #{sepconv_forward.3} parent=5 // pred_fallthru
      _
    %p155 = scmp.le.s32.totalorder 1, %s9
    %p156 = scmp.lt.s32.totalorder %s9, 5
    %p157 = pnand %p155, %p156
    %p158 = pneg %p157
    // Predicated region
    $region29: #{sepconv_forward.3} parent=5 // pred_check
      _
    $region30: #{sepconv_forward.3} parent=5 // pred_check_branch
      %160 = sbr.rel (%p157) target = $region32
    $region31: #{sepconv_forward.3} parent=5 // pred_region
      %s161 = ssub.s32 %s9, 1
      %p162 = scmp.lt.s32.totalorder %s18, 1
      %s163 = scalar_select %p162, %s18, 1
      %p164 = scmp.lt.s32.totalorder %s19, 1
      %s165 = scalar_select %p164, %s19, 1
      %s166 = smul.addr %s163, 2
      %s167 = sadd.s32 %s165, %s166
      %s168 = smul.addr %s167, 8
      %s169 = scalar_lea.vmem %s0, %s168
      %p170 = pneg %p49
      %p171 = pneg %p46
      %p172 = pneg %p70
      %p173 = pneg %p67
      %p174 = pneg %p91
      %p175 = pneg %p88
      %p176 = pneg %p119
      %p177 = pneg %p116
      %p178 = scmp.lt.s32.totalorder %s18, 1
      %s179 = scalar_select %p178, %s18, 1
      %p180 = scmp.lt.s32.totalorder %s19, 1
      %s181 = scalar_select %p180, %s19, 1
      %s182 = smul.addr %s179, 2
      %s183 = sadd.s32 %s181, %s182
      %s184 = smul.addr %s183, 8
      %s185 = scalar_lea.vmem %s3, %s184
      %p186 = scmp.lt.s32.totalorder %s18, 1
      %s187 = scalar_select %p186, %s18, 1
      %p188 = scmp.lt.s32.totalorder %s19, 1
      %s189 = scalar_select %p188, %s19, 1
      %s190 = smul.addr %s187, 2
      %s191 = sadd.s32 %s189, %s190
      %s192 = smul.addr %s191, 8
      %s193 = scalar_lea.vmem %s0, %s192
      %p194 = scmp.lt.s32.totalorder %s18, 1
      %s195 = scalar_select %p194, %s18, 1
      %p196 = scmp.lt.s32.totalorder %s19, 1
      %s197 = scalar_select %p196, %s19, 1
      %s198 = smul.addr %s195, 2
      %s199 = sadd.s32 %s197, %s198
      %s200 = smul.addr %s199, 8
      %s201 = scalar_lea.vmem %s3, %s200
      %v202 = vld [vmem:[%s193] sm:$0xff]
      %v203 = vld [vmem:[%s1] sm:$0xff]
      %205 = vset.pattern.permute.xlu0 0
      %206 = vperm.xlu0 %205, %v203
      %v207 = vpop.permute.xlu0 %206
      %v209 = vmul.f32 %v202, %v207
      %v210 = vld [vmem:[%s2] sm:$0xff]
      %212 = vset.pattern.permute.xlu0 0
      %213 = vperm.xlu0 %212, %v210
      %v214 = vpop.permute.xlu0 %213
      %v216 = vadd.f32 %v209, %v214
      %217 = vst [vmem:[%s201] sm:$0xff] %v216
      %p218 = scmp.lt.s32.totalorder %s18, 1
      %s219 = scalar_select %p218, %s18, 1
      %p220 = scmp.lt.s32.totalorder %s19, 1
      %s221 = scalar_select %p220, %s19, 1
      %s222 = smul.addr %s219, 2
      %s223 = sadd.s32 %s221, %s222
      %s224 = smul.addr %s223, 8
      %s225 = scalar_lea.vmem %s3, %s224
      // Predicated region
      $region33: #{sepconv_forward.3} parent=31 // pred_check
        %p226 = pneg %p116
      $region34: #{sepconv_forward.3} parent=31 // pred_check_branch
        %228 = sbr.rel (%p226) target = $region36
      $region35: #{sepconv_forward.3} parent=31 // pred_region
        _
      $region36: #{sepconv_forward.3} parent=31 // pred_fallthru
        _
    $region32: #{sepconv_forward.3} parent=5 // pred_fallthru
      _
    %p229 = scmp.le.s32.totalorder 2, %s9
    // Predicated region
    $region37: #{sepconv_forward.3} parent=5 // pred_check
      %p230 = pneg %p229
    $region38: #{sepconv_forward.3} parent=5 // pred_check_branch
      %232 = sbr.rel (%p230) target = $region40
    $region39: #{sepconv_forward.3} parent=5 // pred_region
      %s233 = ssub.s32 %s9, 2
      // Predicated region
      $region41: #{sepconv_forward.3} parent=39 // pred_check
        %p234 = pneg %p122
      $region42: #{sepconv_forward.3} parent=39 // pred_check_branch
        %236 = sbr.rel (%p234) target = $region44
      $region43: #{sepconv_forward.3} parent=39 // pred_region
        %p237 = scmp.lt.s32.totalorder %s20, 1
        %s238 = scalar_select %p237, %s20, 1
        %p239 = scmp.lt.s32.totalorder %s21, 1
        %s240 = scalar_select %p239, %s21, 1
        %s241 = smul.addr %s238, 2
        %s242 = sadd.s32 %s240, %s241
        %s243 = smul.addr %s242, 8
        %s244 = scalar_lea.vmem %s3, %s243
      $region44: #{sepconv_forward.3} parent=39 // pred_fallthru
        _
    $region40: #{sepconv_forward.3} parent=5 // pred_fallthru
      _
  $region6: #{sepconv_forward.3} parent=0 // loop_footer
    %s13 = sadd.s32 1, %s9
  $region7: #{sepconv_forward.3} parent=0 // loop_footer_branch
    %8 = sbr.rel target = $region3
  $region8: #{sepconv_forward.3} parent=0 // loop_exit
    _

// kernel: sepconv_forward.2
$region0: #{sepconv_forward.2}
  #allocation0 [shape = 'u32[]', space=smem, size = 0x4, offset = 0x4, fixed_abs, tag = 'smem constant byte address 0x4 - core index']
  #allocation1 [shape = 'u32[144,128]{1,0:T(1,128)}', space=vmem, size = 0x12000, scoped, tag = 'internal scratch']
  #allocation2 [shape = 'f32[18,18,4]{2,1,0:T(8,128)}', space=vmem, size = 0x36000, scoped, tag = 'scratch operand']
  %s0 = inlined_call_operand.vmem [shape: f32[2,16,16,4], index: 0, kind: input, shape index: {}]
  %s1 = inlined_call_operand.vmem [shape: f32[8,36], index: 1, kind: input, shape index: {}]
  %s2 = inlined_call_operand.vmem [shape: f32[8,1], index: 2, kind: input, shape index: {}]
  %s3 = inlined_call_operand.vmem [shape: f32[2,8,256], index: 3, kind: output, shape index: {0}]
  %s4 = inlined_call_operand.vmem [shape: f32[2,8,1], index: 4, kind: output, shape index: {1}]
  %s5 = inlined_call_operand.vmem [shape: f32[2,8,1], index: 5, kind: output, shape index: {2}]
  %6 = xla_tuple %s3, %s4, %s5
  %s7 = sld [smem:[#allocation0]]
  $region61: #{sepconv_forward.2} parent=0
    _
  %s9 = ssub.s32 1, %s7
  %s10 = scalar_select 0, %s9, %s7
  loop: start=0, step=1, limit=4
  $region2: #{sepconv_forward.2} parent=0 // loop_pre_header
    _
  $region3: #{sepconv_forward.2} parent=0 // loop_header
    %s12 = sphi 0, %s16
    %p13 = scmp.ge.s32.totalorder %s12, 4
    %s22 = sphi 0, %s24
    %s25 = sphi 0, %s22
    %s26 = sphi 0, %s25
    %s42 = sphi 0, %s26
    %s46 = sphi 0, %s46
    %s48 = sphi 0, %s46
    %s49 = sphi 0, %s48
    %s63 = sphi 0, %s49
    %s67 = sphi 0, %s67
    %s69 = sphi 0, %s67
    %s70 = sphi 0, %s69
    %s84 = sphi 0, %s70
    %s90 = sphi 0, %s92
    %s93 = sphi 0, %s90
    %s94 = sphi 0, %s93
    %s110 = sphi 0, %s94
    %s116 = sphi 0, %s118
    %s119 = sphi 0, %s116
    %s120 = sphi 0, %s119
    %s136 = sphi 0, %s120
    %s142 = sphi 0, %s144
    %s145 = sphi 0, %s142
    %s146 = sphi 0, %s145
    %s162 = sphi 0, %s146
  $region4: #{sepconv_forward.2} parent=0 // loop_header_branch
    %15 = sbr.rel (%p13) target = $region8
  $region5: #{sepconv_forward.2} parent=0 // loop_body
    %s17 = ssub.s32 %s12, 1
    %s18 = ssub.s32 %s12, 2
    %s19 = sadd.s32 %s12, 1
    %s20 = ssub.s32 %s12, %s19
    %p21 = scmp.eq.s32.totalorder %s20, 0
    %s23 = sadd.s32 %s22, 1
    %s24 = scalar_select %p21, %s22, %s23
    %p27 = pneg %p21
    %p28 = scmp.eq.s32.totalorder %s12, 1
    %p29 = por %p27, %p28
    %p30 = scmp.ne.s32.totalorder %s22, %s25
    %p31 = scmp.eq.s32.totalorder %s12, 0
    %p32 = por %p30, %p31
    %p33 = scmp.ne.s32.totalorder %s22, %s25
    %p34 = scmp.eq.s32.totalorder %s17, 1
    %p35 = por %p33, %p34
    %p36 = scmp.ne.s32.totalorder %s25, %s26
    %p37 = scmp.eq.s32.totalorder %s17, 0
    %p38 = por %p36, %p37
    %p39 = scmp.ne.s32.totalorder %s25, %s26
    %p40 = scmp.eq.s32.totalorder %s18, 1
    %p41 = por %p39, %p40
    %p43 = scmp.ne.s32.totalorder %s26, %s42
    %p44 = scmp.eq.s32.totalorder %s18, 0
    %p45 = por %p43, %p44
    %s47 = sadd.s32 %s46, 1
    %p50 = scmp.eq.s32.totalorder %s12, 1
    %p51 = scmp.ne.s32.totalorder %s46, %s48
    %p52 = scmp.eq.s32.totalorder %s12, 0
    %p53 = por %p51, %p52
    %p54 = scmp.ne.s32.totalorder %s46, %s48
    %p55 = scmp.eq.s32.totalorder %s17, 1
    %p56 = por %p54, %p55
    %p57 = scmp.ne.s32.totalorder %s48, %s49
    %p58 = scmp.eq.s32.totalorder %s17, 0
    %p59 = por %p57, %p58
    %p60 = scmp.ne.s32.totalorder %s48, %s49
    %p61 = scmp.eq.s32.totalorder %s18, 1
    %p62 = por %p60, %p61
    %p64 = scmp.ne.s32.totalorder %s49, %s63
    %p65 = scmp.eq.s32.totalorder %s18, 0
    %p66 = por %p64, %p65
    %s68 = sadd.s32 %s67, 1
    %p71 = scmp.eq.s32.totalorder %s12, 1
    %p72 = scmp.ne.s32.totalorder %s67, %s69
    %p73 = scmp.eq.s32.totalorder %s12, 0
    %p74 = por %p72, %p73
    %p75 = scmp.ne.s32.totalorder %s67, %s69
    %p76 = scmp.eq.s32.totalorder %s17, 1
    %p77 = por %p75, %p76
    %p78 = scmp.ne.s32.totalorder %s69, %s70
    %p79 = scmp.eq.s32.totalorder %s17, 0
    %p80 = por %p78, %p79
    %p81 = scmp.ne.s32.totalorder %s69, %s70
    %p82 = scmp.eq.s32.totalorder %s18, 1
    %p83 = por %p81, %p82
    %p85 = scmp.ne.s32.totalorder %s70, %s84
    %p86 = scmp.eq.s32.totalorder %s18, 0
    %p87 = por %p85, %p86
    %s88 = ssub.s32 %s12, %s19
    %p89 = scmp.eq.s32.totalorder %s88, 0
    %s91 = sadd.s32 %s90, 1
    %s92 = scalar_select %p89, %s90, %s91
    %p95 = pneg %p89
    %p96 = scmp.eq.s32.totalorder %s12, 1
    %p97 = por %p95, %p96
    %p98 = scmp.ne.s32.totalorder %s90, %s93
    %p99 = scmp.eq.s32.totalorder %s12, 0
    %p100 = por %p98, %p99
    %p101 = scmp.ne.s32.totalorder %s90, %s93
    %p102 = scmp.eq.s32.totalorder %s17, 1
    %p103 = por %p101, %p102
    %p104 = scmp.ne.s32.totalorder %s93, %s94
    %p105 = scmp.eq.s32.totalorder %s17, 0
    %p106 = por %p104, %p105
    %p107 = scmp.ne.s32.totalorder %s93, %s94
    %p108 = scmp.eq.s32.totalorder %s18, 1
    %p109 = por %p107, %p108
    %p111 = scmp.ne.s32.totalorder %s94, %s110
    %p112 = scmp.eq.s32.totalorder %s18, 0
    %p113 = por %p111, %p112
    %s114 = ssub.s32 %s12, %s19
    %p115 = scmp.eq.s32.totalorder %s114, 0
    %s117 = sadd.s32 %s116, 1
    %s118 = scalar_select %p115, %s116, %s117
    %p121 = pneg %p115
    %p122 = scmp.eq.s32.totalorder %s12, 1
    %p123 = por %p121, %p122
    %p124 = scmp.ne.s32.totalorder %s116, %s119
    %p125 = scmp.eq.s32.totalorder %s12, 0
    %p126 = por %p124, %p125
    %p127 = scmp.ne.s32.totalorder %s116, %s119
    %p128 = scmp.eq.s32.totalorder %s17, 1
    %p129 = por %p127, %p128
    %p130 = scmp.ne.s32.totalorder %s119, %s120
    %p131 = scmp.eq.s32.totalorder %s17, 0
    %p132 = por %p130, %p131
    %p133 = scmp.ne.s32.totalorder %s119, %s120
    %p134 = scmp.eq.s32.totalorder %s18, 1
    %p135 = por %p133, %p134
    %p137 = scmp.ne.s32.totalorder %s120, %s136
    %p138 = scmp.eq.s32.totalorder %s18, 0
    %p139 = por %p137, %p138
    %s140 = ssub.s32 %s12, %s19
    %p141 = scmp.eq.s32.totalorder %s140, 0
    %s143 = sadd.s32 %s142, 1
    %s144 = scalar_select %p141, %s142, %s143
    %p147 = pneg %p141
    %p148 = scmp.eq.s32.totalorder %s12, 1
    %p149 = por %p147, %p148
    %p150 = scmp.ne.s32.totalorder %s142, %s145
    %p151 = scmp.eq.s32.totalorder %s12, 0
    %p152 = por %p150, %p151
    %p153 = scmp.ne.s32.totalorder %s142, %s145
    %p154 = scmp.eq.s32.totalorder %s17, 1
    %p155 = por %p153, %p154
    %p156 = scmp.ne.s32.totalorder %s145, %s146
    %p157 = scmp.eq.s32.totalorder %s17, 0
    %p158 = por %p156, %p157
    %p159 = scmp.ne.s32.totalorder %s145, %s146
    %p160 = scmp.eq.s32.totalorder %s18, 1
    %p161 = por %p159, %p160
    %p163 = scmp.ne.s32.totalorder %s146, %s162
    %p164 = scmp.eq.s32.totalorder %s18, 0
    %p165 = por %p163, %p164
    %p166 = scmp.le.s32.totalorder 1, %s12
    %p167 = scmp.lt.s32.totalorder %s12, 3
    %p168 = pnand %p166, %p167
    %p169 = pneg %p168
    // Predicated region
    $region9: #{sepconv_forward.2} parent=5 // pred_check
      _
    $region10: #{sepconv_forward.2} parent=5 // pred_check_branch
      %171 = sbr.rel (%p168) target = $region12
    $region11: #{sepconv_forward.2} parent=5 // pred_region
      %s172 = ssub.s32 %s12, 1
      // Predicated region
      $region13: #{sepconv_forward.2} parent=11 // pred_check
        %p173 = pneg %p59
      $region14: #{sepconv_forward.2} parent=11 // pred_check_branch
        %175 = sbr.rel (%p173) target = $region16
      $region15: #{sepconv_forward.2} parent=11 // pred_region
        _
      $region16: #{sepconv_forward.2} parent=11 // pred_fallthru
        _
      // Predicated region
      $region17: #{sepconv_forward.2} parent=11 // pred_check
        %p176 = pneg %p80
      $region18: #{sepconv_forward.2} parent=11 // pred_check_branch
        %178 = sbr.rel (%p176) target = $region20
      $region19: #{sepconv_forward.2} parent=11 // pred_region
        _
      $region20: #{sepconv_forward.2} parent=11 // pred_fallthru
        _
    $region12: #{sepconv_forward.2} parent=5 // pred_fallthru
      _
    %p179 = scmp.lt.s32.totalorder %s12, 2
    // Predicated region
    $region21: #{sepconv_forward.2} parent=5 // pred_check
      %p180 = pneg %p179
    $region22: #{sepconv_forward.2} parent=5 // pred_check_branch
      %182 = sbr.rel (%p180) target = $region24
    $region23: #{sepconv_forward.2} parent=5 // pred_region
      // Predicated region
      $region25: #{sepconv_forward.2} parent=23 // pred_check
        %p183 = pneg %p32
      $region26: #{sepconv_forward.2} parent=23 // pred_check_branch
        %185 = sbr.rel (%p183) target = $region28
      $region27: #{sepconv_forward.2} parent=23 // pred_region
        %p186 = scmp.lt.s32.totalorder %s12, 1
        %s187 = scalar_select %p186, %s12, 1
        %s188 = smul.addr %s187, 32
        %s189 = smul.addr %s188, 8
        %s190 = scalar_lea.vmem %s0, %s189
      $region28: #{sepconv_forward.2} parent=23 // pred_fallthru
        _
    $region24: #{sepconv_forward.2} parent=5 // pred_fallthru
      _
    %p191 = scmp.le.s32.totalorder 1, %s12
    %p192 = scmp.lt.s32.totalorder %s12, 3
    %p193 = pnand %p191, %p192
    %p194 = pneg %p193
    // Predicated region
    $region29: #{sepconv_forward.2} parent=5 // pred_check
      _
    $region30: #{sepconv_forward.2} parent=5 // pred_check_branch
      %196 = sbr.rel (%p193) target = $region32
    $region31: #{sepconv_forward.2} parent=5 // pred_region
      %s197 = ssub.s32 %s12, 1
      %p198 = scmp.lt.s32.totalorder %s17, 1
      %s199 = scalar_select %p198, %s17, 1
      %s200 = smul.addr %s199, 32
      %s201 = smul.addr %s200, 8
      %s202 = scalar_lea.vmem %s0, %s201
      %p203 = pneg %p38
      %p204 = pneg %p35
      %p205 = pneg %p59
      %p206 = pneg %p56
      %p207 = pneg %p80
      %p208 = pneg %p77
      %p209 = pneg %p106
      %p210 = pneg %p103
      %p211 = scmp.lt.s32.totalorder %s17, 1
      %s212 = scalar_select %p211, %s17, 1
      %s213 = smul.addr %s212, 2
      %s214 = smul.addr %s213, 8
      %s215 = scalar_lea.vmem %s3, %s214
      %p216 = pneg %p132
      %p217 = pneg %p129
      %p218 = scmp.lt.s32.totalorder %s17, 1
      %s219 = scalar_select %p218, %s17, 1
      %s220 = smul.addr %s219, 8
      %s221 = scalar_lea.vmem %s4, %s220
      %p222 = pneg %p158
      %p223 = pneg %p155
      %p224 = scmp.lt.s32.totalorder %s17, 1
      %s225 = scalar_select %p224, %s17, 1
      %s226 = smul.addr %s225, 8
      %s227 = scalar_lea.vmem %s5, %s226
      %p228 = scmp.lt.s32.totalorder %s17, 1
      %s229 = scalar_select %p228, %s17, 1
      %s230 = smul.addr %s229, 32
      %s231 = smul.addr %s230, 8
      %s232 = scalar_lea.vmem %s0, %s231
      %p233 = scmp.lt.s32.totalorder %s17, 1
      %s234 = scalar_select %p233, %s17, 1
      %s235 = smul.addr %s234, 2
      %s236 = smul.addr %s235, 8
      %s237 = scalar_lea.vmem %s3, %s236
      %p238 = scmp.lt.s32.totalorder %s17, 1
      %s239 = scalar_select %p238, %s17, 1
      %s240 = smul.addr %s239, 8
      %s241 = scalar_lea.vmem %s4, %s240
      %p242 = scmp.lt.s32.totalorder %s17, 1
      %s243 = scalar_select %p242, %s17, 1
      %s244 = smul.addr %s243, 8
      %s245 = scalar_lea.vmem %s5, %s244
      %vm246 = vcmask 31744
      %247 = vst.msk [vmem:[#allocation2] sm:$0xff] %vm246, 0.0
      %248 = vst.msk [vmem:[#allocation2 + $0x8] sm:$0xff] %vm246, 0.0
      %vm249 = vcmask 25600
      %250 = vst.msk [vmem:[#allocation2 + $0x10] sm:$0x3] %vm249, 0.0
      %251 = vst.msk [vmem:[#allocation2 + $0x18] sm:$0xff] %vm246, 0.0
      %252 = vst.msk [vmem:[#allocation2 + $0x20] sm:$0xff] %vm246, 0.0
      %253 = vst.msk [vmem:[#allocation2 + $0x28] sm:$0x3] %vm249, 0.0
      %254 = vst.msk [vmem:[#allocation2 + $0x30] sm:$0xff] %vm246, 0.0
      %255 = vst.msk [vmem:[#allocation2 + $0x38] sm:$0xff] %vm246, 0.0
      %256 = vst.msk [vmem:[#allocation2 + $0x40] sm:$0x3] %vm249, 0.0
      %257 = vst.msk [vmem:[#allocation2 + $0x48] sm:$0xff] %vm246, 0.0
      %258 = vst.msk [vmem:[#allocation2 + $0x50] sm:$0xff] %vm246, 0.0
      %259 = vst.msk [vmem:[#allocation2 + $0x58] sm:$0x3] %vm249, 0.0
      %260 = vst.msk [vmem:[#allocation2 + $0x60] sm:$0xff] %vm246, 0.0
      %261 = vst.msk [vmem:[#allocation2 + $0x68] sm:$0xff] %vm246, 0.0
      %262 = vst.msk [vmem:[#allocation2 + $0x70] sm:$0x3] %vm249, 0.0
      %263 = vst.msk [vmem:[#allocation2 + $0x78] sm:$0xff] %vm246, 0.0
      %264 = vst.msk [vmem:[#allocation2 + $0x80] sm:$0xff] %vm246, 0.0
      %265 = vst.msk [vmem:[#allocation2 + $0x88] sm:$0x3] %vm249, 0.0
      %266 = vst.msk [vmem:[#allocation2 + $0x90] sm:$0xff] %vm246, 0.0
      %267 = vst.msk [vmem:[#allocation2 + $0x98] sm:$0xff] %vm246, 0.0
      %268 = vst.msk [vmem:[#allocation2 + $0xa0] sm:$0x3] %vm249, 0.0
      %269 = vst.msk [vmem:[#allocation2 + $0xa8] sm:$0xff] %vm246, 0.0
      %270 = vst.msk [vmem:[#allocation2 + $0xb0] sm:$0xff] %vm246, 0.0
      %271 = vst.msk [vmem:[#allocation2 + $0xb8] sm:$0x3] %vm249, 0.0
      %272 = vst.msk [vmem:[#allocation2 + $0xc0] sm:$0xff] %vm246, 0.0
      %273 = vst.msk [vmem:[#allocation2 + $0xc8] sm:$0xff] %vm246, 0.0
      %274 = vst.msk [vmem:[#allocation2 + $0xd0] sm:$0x3] %vm249, 0.0
      %275 = vst.msk [vmem:[#allocation2 + $0xd8] sm:$0xff] %vm246, 0.0
      %276 = vst.msk [vmem:[#allocation2 + $0xe0] sm:$0xff] %vm246, 0.0
      %277 = vst.msk [vmem:[#allocation2 + $0xe8] sm:$0x3] %vm249, 0.0
      %278 = vst.msk [vmem:[#allocation2 + $0xf0] sm:$0xff] %vm246, 0.0
      %279 = vst.msk [vmem:[#allocation2 + $0xf8] sm:$0xff] %vm246, 0.0
      %280 = vst.msk [vmem:[#allocation2 + $0x100] sm:$0x3] %vm249, 0.0
      %281 = vst.msk [vmem:[#allocation2 + $0x108] sm:$0xff] %vm246, 0.0
      %282 = vst.msk [vmem:[#allocation2 + $0x110] sm:$0xff] %vm246, 0.0
      %283 = vst.msk [vmem:[#allocation2 + $0x118] sm:$0x3] %vm249, 0.0
      %284 = vst.msk [vmem:[#allocation2 + $0x120] sm:$0xff] %vm246, 0.0
      %285 = vst.msk [vmem:[#allocation2 + $0x128] sm:$0xff] %vm246, 0.0
      %286 = vst.msk [vmem:[#allocation2 + $0x130] sm:$0x3] %vm249, 0.0
      %287 = vst.msk [vmem:[#allocation2 + $0x138] sm:$0xff] %vm246, 0.0
      %288 = vst.msk [vmem:[#allocation2 + $0x140] sm:$0xff] %vm246, 0.0
      %289 = vst.msk [vmem:[#allocation2 + $0x148] sm:$0x3] %vm249, 0.0
      %290 = vst.msk [vmem:[#allocation2 + $0x150] sm:$0xff] %vm246, 0.0
      %291 = vst.msk [vmem:[#allocation2 + $0x158] sm:$0xff] %vm246, 0.0
      %292 = vst.msk [vmem:[#allocation2 + $0x160] sm:$0x3] %vm249, 0.0
      %293 = vst.msk [vmem:[#allocation2 + $0x168] sm:$0xff] %vm246, 0.0
      %294 = vst.msk [vmem:[#allocation2 + $0x170] sm:$0xff] %vm246, 0.0
      %295 = vst.msk [vmem:[#allocation2 + $0x178] sm:$0x3] %vm249, 0.0
      %296 = vst.msk [vmem:[#allocation2 + $0x180] sm:$0xff] %vm246, 0.0
      %297 = vst.msk [vmem:[#allocation2 + $0x188] sm:$0xff] %vm246, 0.0
      %298 = vst.msk [vmem:[#allocation2 + $0x190] sm:$0x3] %vm249, 0.0
      %299 = vst.msk [vmem:[#allocation2 + $0x198] sm:$0xff] %vm246, 0.0
      %300 = vst.msk [vmem:[#allocation2 + $0x1a0] sm:$0xff] %vm246, 0.0
      %301 = vst.msk [vmem:[#allocation2 + $0x1a8] sm:$0x3] %vm249, 0.0
      %v302 = vld [vmem:[%s232] sm:$0xff]
      %v303 = vld [vmem:[%s232 + $0x8] sm:$0xff]
      %v304 = vld [vmem:[%s232 + $0x10] sm:$0xff]
      %v305 = vld [vmem:[%s232 + $0x18] sm:$0xff]
      %v306 = vld [vmem:[%s232 + $0x20] sm:$0xff]
      %v307 = vld [vmem:[%s232 + $0x28] sm:$0xff]
      %v308 = vld [vmem:[%s232 + $0x30] sm:$0xff]
      %v309 = vld [vmem:[%s232 + $0x38] sm:$0xff]
      %v310 = vld [vmem:[%s232 + $0x40] sm:$0xff]
      %v311 = vld [vmem:[%s232 + $0x48] sm:$0xff]
      %v312 = vld [vmem:[%s232 + $0x50] sm:$0xff]
      %v313 = vld [vmem:[%s232 + $0x58] sm:$0xff]
      %v314 = vld [vmem:[%s232 + $0x60] sm:$0xff]
      %v315 = vld [vmem:[%s232 + $0x68] sm:$0xff]
      %v316 = vld [vmem:[%s232 + $0x70] sm:$0xff]
      %v317 = vld [vmem:[%s232 + $0x78] sm:$0xff]
      %v318 = vld [vmem:[%s232 + $0x80] sm:$0xff]
      %v319 = vld [vmem:[%s232 + $0x88] sm:$0xff]
      %v320 = vld [vmem:[%s232 + $0x90] sm:$0xff]
      %v321 = vld [vmem:[%s232 + $0x98] sm:$0xff]
      %v322 = vld [vmem:[%s232 + $0xa0] sm:$0xff]
      %v323 = vld [vmem:[%s232 + $0xa8] sm:$0xff]
      %v324 = vld [vmem:[%s232 + $0xb0] sm:$0xff]
      %v325 = vld [vmem:[%s232 + $0xb8] sm:$0xff]
      %v326 = vld [vmem:[%s232 + $0xc0] sm:$0xff]
      %v327 = vld [vmem:[%s232 + $0xc8] sm:$0xff]
      %v328 = vld [vmem:[%s232 + $0xd0] sm:$0xff]
      %v329 = vld [vmem:[%s232 + $0xd8] sm:$0xff]
      %v330 = vld [vmem:[%s232 + $0xe0] sm:$0xff]
      %v331 = vld [vmem:[%s232 + $0xe8] sm:$0xff]
      %v332 = vld [vmem:[%s232 + $0xf0] sm:$0xff]
      %v333 = vld [vmem:[%s232 + $0xf8] sm:$0xff]
      %v334 = vmax.f32 %v302, 0.0
      %v335 = vmax.f32 %v303, 0.0
      %v336 = vmax.f32 %v304, 0.0
      %v337 = vmax.f32 %v305, 0.0
      %v338 = vmax.f32 %v306, 0.0
      %v339 = vmax.f32 %v307, 0.0
      %v340 = vmax.f32 %v308, 0.0
      %v341 = vmax.f32 %v309, 0.0
      %v342 = vmax.f32 %v310, 0.0
      %v343 = vmax.f32 %v311, 0.0
      %v344 = vmax.f32 %v312, 0.0
      %v345 = vmax.f32 %v313, 0.0
      %v346 = vmax.f32 %v314, 0.0
      %v347 = vmax.f32 %v315, 0.0
      %v348 = vmax.f32 %v316, 0.0
      %v349 = vmax.f32 %v317, 0.0
      %v350 = vmax.f32 %v318, 0.0
      %v351 = vmax.f32 %v319, 0.0
      %v352 = vmax.f32 %v320, 0.0
      %v353 = vmax.f32 %v321, 0.0
      %v354 = vmax.f32 %v322, 0.0
      %v355 = vmax.f32 %v323, 0.0
      %v356 = vmax.f32 %v324, 0.0
      %v357 = vmax.f32 %v325, 0.0
      %v358 = vmax.f32 %v326, 0.0
      %v359 = vmax.f32 %v327, 0.0
      %v360 = vmax.f32 %v328, 0.0
      %v361 = vmax.f32 %v329, 0.0
      %v362 = vmax.f32 %v330, 0.0
      %v363 = vmax.f32 %v331, 0.0
      %v364 = vmax.f32 %v332, 0.0
      %v365 = vmax.f32 %v333, 0.0
      %s366 = scalar_lea.vmem [#allocation2], 24
      %367 = vst.msk [vmem:[%s366 + $0x1] sm:$0xff] %vm246, %v334
      %368 = vst.msk [vmem:[%s366 + $0x9] sm:$0xff] %vm246, %v335
      %369 = vst.msk [vmem:[%s366 + $0x19] sm:$0xff] %vm246, %v336
      %370 = vst.msk [vmem:[%s366 + $0x21] sm:$0xff] %vm246, %v337
      %371 = vst.msk [vmem:[%s366 + $0x31] sm:$0xff] %vm246, %v338
      %372 = vst.msk [vmem:[%s366 + $0x39] sm:$0xff] %vm246, %v339
      %373 = vst.msk [vmem:[%s366 + $0x49] sm:$0xff] %vm246, %v340
      %374 = vst.msk [vmem:[%s366 + $0x51] sm:$0xff] %vm246, %v341
      %375 = vst.msk [vmem:[%s366 + $0x61] sm:$0xff] %vm246, %v342
      %376 = vst.msk [vmem:[%s366 + $0x69] sm:$0xff] %vm246, %v343
      %377 = vst.msk [vmem:[%s366 + $0x79] sm:$0xff] %vm246, %v344
      %378 = vst.msk [vmem:[%s366 + $0x81] sm:$0xff] %vm246, %v345
      %379 = vst.msk [vmem:[%s366 + $0x91] sm:$0xff] %vm246, %v346
      %380 = vst.msk [vmem:[%s366 + $0x99] sm:$0xff] %vm246, %v347
      %381 = vst.msk [vmem:[%s366 + $0xa9] sm:$0xff] %vm246, %v348
      %382 = vst.msk [vmem:[%s366 + $0xb1] sm:$0xff] %vm246, %v349
      %383 = vst.msk [vmem:[%s366 + $0xc1] sm:$0xff] %vm246, %v350
      %384 = vst.msk [vmem:[%s366 + $0xc9] sm:$0xff] %vm246, %v351
      %385 = vst.msk [vmem:[%s366 + $0xd9] sm:$0xff] %vm246, %v352
      %386 = vst.msk [vmem:[%s366 + $0xe1] sm:$0xff] %vm246, %v353
      %387 = vst.msk [vmem:[%s366 + $0xf1] sm:$0xff] %vm246, %v354
      %388 = vst.msk [vmem:[%s366 + $0xf9] sm:$0xff] %vm246, %v355
      %389 = vst.msk [vmem:[%s366 + $0x109] sm:$0xff] %vm246, %v356
      %390 = vst.msk [vmem:[%s366 + $0x111] sm:$0xff] %vm246, %v357
      %391 = vst.msk [vmem:[%s366 + $0x121] sm:$0xff] %vm246, %v358
      %392 = vst.msk [vmem:[%s366 + $0x129] sm:$0xff] %vm246, %v359
      %393 = vst.msk [vmem:[%s366 + $0x139] sm:$0xff] %vm246, %v360
      %394 = vst.msk [vmem:[%s366 + $0x141] sm:$0xff] %vm246, %v361
      %395 = vst.msk [vmem:[%s366 + $0x151] sm:$0xff] %vm246, %v362
      %396 = vst.msk [vmem:[%s366 + $0x159] sm:$0xff] %vm246, %v363
      %397 = vst.msk [vmem:[%s366 + $0x169] sm:$0xff] %vm246, %v364
      %398 = vst.msk [vmem:[%s366 + $0x171] sm:$0xff] %vm246, %v365
      %v399 = vld [vmem:[#allocation2] sm:$0xff]
      %v400 = vld [vmem:[#allocation2 + $0x8] sm:$0xff]
      %v401 = vld [vmem:[#allocation2 + $0x10] sm:$0x3]
      %v402 = vld [vmem:[#allocation2 + $0x18] sm:$0xff]
      %v403 = vld [vmem:[#allocation2 + $0x20] sm:$0xff]
      %v404 = vld [vmem:[#allocation2 + $0x28] sm:$0x3]
      %v405 = vld [vmem:[#allocation2 + $0x30] sm:$0xff]
      %v406 = vld [vmem:[#allocation2 + $0x38] sm:$0xff]
      %v407 = vld [vmem:[#allocation2 + $0x40] sm:$0x3]
      %v408 = vld [vmem:[#allocation2 + $0x48] sm:$0xff]
      %v409 = vld [vmem:[#allocation2 + $0x50] sm:$0xff]
      %v410 = vld [vmem:[#allocation2 + $0x58] sm:$0x3]
      %v411 = vld [vmem:[#allocation2 + $0x60] sm:$0xff]
      %v412 = vld [vmem:[#allocation2 + $0x68] sm:$0xff]
      %v413 = vld [vmem:[#allocation2 + $0x70] sm:$0x3]
      %v414 = vld [vmem:[#allocation2 + $0x78] sm:$0xff]
      %v415 = vld [vmem:[#allocation2 + $0x80] sm:$0xff]
      %v416 = vld [vmem:[#allocation2 + $0x88] sm:$0x3]
      %v417 = vld [vmem:[#allocation2 + $0x90] sm:$0xff]
      %v418 = vld [vmem:[#allocation2 + $0x98] sm:$0xff]
      %v419 = vld [vmem:[#allocation2 + $0xa0] sm:$0x3]
      %v420 = vld [vmem:[#allocation2 + $0xa8] sm:$0xff]
      %v421 = vld [vmem:[#allocation2 + $0xb0] sm:$0xff]
      %v422 = vld [vmem:[#allocation2 + $0xb8] sm:$0x3]
      %v423 = vld [vmem:[#allocation2 + $0xc0] sm:$0xff]
      %v424 = vld [vmem:[#allocation2 + $0xc8] sm:$0xff]
      %v425 = vld [vmem:[#allocation2 + $0xd0] sm:$0x3]
      %v426 = vld [vmem:[#allocation2 + $0xd8] sm:$0xff]
      %v427 = vld [vmem:[#allocation2 + $0xe0] sm:$0xff]
      %v428 = vld [vmem:[#allocation2 + $0xe8] sm:$0x3]
      %v429 = vld [vmem:[#allocation2 + $0xf0] sm:$0xff]
      %v430 = vld [vmem:[#allocation2 + $0xf8] sm:$0xff]
      %v431 = vld [vmem:[#allocation2 + $0x100] sm:$0x3]
      %v432 = vld [vmem:[#allocation2 + $0x108] sm:$0xff]
      %v433 = vld [vmem:[#allocation2 + $0x110] sm:$0xff]
      %v434 = vld [vmem:[#allocation2 + $0x118] sm:$0x3]
      %v435 = vld [vmem:[#allocation2 + $0x120] sm:$0xff]
      %v436 = vld [vmem:[#allocation2 + $0x128] sm:$0xff]
      %v437 = vld [vmem:[#allocation2 + $0x130] sm:$0x3]
      %v438 = vld [vmem:[#allocation2 + $0x138] sm:$0xff]
      %v439 = vld [vmem:[#allocation2 + $0x140] sm:$0xff]
      %v440 = vld [vmem:[#allocation2 + $0x148] sm:$0x3]
      %v441 = vld [vmem:[#allocation2 + $0x150] sm:$0xff]
      %v442 = vld [vmem:[#allocation2 + $0x158] sm:$0xff]
      %v443 = vld [vmem:[#allocation2 + $0x160] sm:$0x3]
      %v444 = vld [vmem:[#allocation2 + $0x168] sm:$0xff]
      %v445 = vld [vmem:[#allocation2 + $0x170] sm:$0xff]
      %v446 = vld [vmem:[#allocation2 + $0x178] sm:$0x3]
      %v447 = vld [vmem:[#allocation2 + $0x180] sm:$0xff]
      %v448 = vld [vmem:[#allocation2 + $0x188] sm:$0xff]
      %v449 = vld [vmem:[#allocation2 + $0x190] sm:$0x3]
      %v450 = vld [vmem:[#allocation2 + $0x198] sm:$0xff]
      %v451 = vld [vmem:[#allocation2 + $0x1a0] sm:$0xff]
      %v452 = vld [vmem:[#allocation2 + $0x1a8] sm:$0x3]
      %vm501 = vcmask 1046528
      %v502 = vrot.slane %v399, 1
      %v503 = vrot.slane %v400, 1
      %v504 = vsel %vm501, %v502, %v503
      %v505 = vrot.slane %v401, 1
      %v506 = vsel %vm501, %v503, %v505
      %v507 = vrot.slane %v402, 1
      %v508 = vrot.slane %v403, 1
      %v509 = vsel %vm501, %v507, %v508
      %v510 = vrot.slane %v404, 1
      %v511 = vsel %vm501, %v508, %v510
      %v512 = vrot.slane %v405, 1
      %v513 = vrot.slane %v406, 1
      %v514 = vsel %vm501, %v512, %v513
      %v515 = vrot.slane %v407, 1
      %v516 = vsel %vm501, %v513, %v515
      %v517 = vrot.slane %v408, 1
      %v518 = vrot.slane %v409, 1
      %v519 = vsel %vm501, %v517, %v518
      %v520 = vrot.slane %v410, 1
      %v521 = vsel %vm501, %v518, %v520
      %v522 = vrot.slane %v411, 1
      %v523 = vrot.slane %v412, 1
      %v524 = vsel %vm501, %v522, %v523
      %v525 = vrot.slane %v413, 1
      %v526 = vsel %vm501, %v523, %v525
      %v527 = vrot.slane %v414, 1
      %v528 = vrot.slane %v415, 1
      %v529 = vsel %vm501, %v527, %v528
      %v530 = vrot.slane %v416, 1
      %v531 = vsel %vm501, %v528, %v530
      %v532 = vrot.slane %v417, 1
      %v533 = vrot.slane %v418, 1
      %v534 = vsel %vm501, %v532, %v533
      %v535 = vrot.slane %v419, 1
      %v536 = vsel %vm501, %v533, %v535
      %v537 = vrot.slane %v420, 1
      %v538 = vrot.slane %v421, 1
      %v539 = vsel %vm501, %v537, %v538
      %v540 = vrot.slane %v422, 1
      %v541 = vsel %vm501, %v538, %v540
      %v542 = vrot.slane %v423, 1
      %v543 = vrot.slane %v424, 1
      %v544 = vsel %vm501, %v542, %v543
      %v545 = vrot.slane %v425, 1
      %v546 = vsel %vm501, %v543, %v545
      %v547 = vrot.slane %v426, 1
      %v548 = vrot.slane %v427, 1
      %v549 = vsel %vm501, %v547, %v548
      %v550 = vrot.slane %v428, 1
      %v551 = vsel %vm501, %v548, %v550
      %v552 = vrot.slane %v429, 1
      %v553 = vrot.slane %v430, 1
      %v554 = vsel %vm501, %v552, %v553
      %v555 = vrot.slane %v431, 1
      %v556 = vsel %vm501, %v553, %v555
      %v557 = vrot.slane %v432, 1
      %v558 = vrot.slane %v433, 1
      %v559 = vsel %vm501, %v557, %v558
      %v560 = vrot.slane %v434, 1
      %v561 = vsel %vm501, %v558, %v560
      %v562 = vrot.slane %v435, 1
      %v563 = vrot.slane %v436, 1
      %v564 = vsel %vm501, %v562, %v563
      %v565 = vrot.slane %v437, 1
      %v566 = vsel %vm501, %v563, %v565
      %v567 = vrot.slane %v438, 1
      %v568 = vrot.slane %v439, 1
      %v569 = vsel %vm501, %v567, %v568
      %v570 = vrot.slane %v440, 1
      %v571 = vsel %vm501, %v568, %v570
      %v572 = vrot.slane %v441, 1
      %v573 = vrot.slane %v442, 1
      %v574 = vsel %vm501, %v572, %v573
      %v575 = vrot.slane %v443, 1
      %v576 = vsel %vm501, %v573, %v575
      %v577 = vrot.slane %v444, 1
      %v578 = vrot.slane %v445, 1
      %v579 = vsel %vm501, %v577, %v578
      %v580 = vrot.slane %v446, 1
      %v581 = vsel %vm501, %v578, %v580
      %582 = vrot.lane.b32.xlu0 %v504, 4
      %v583 = vpop.permute.xlu0 %582
      %584 = vrot.lane.b32.xlu0 %v506, 4
      %v585 = vpop.permute.xlu0 %584
      %586 = vrot.lane.b32.xlu0 %v509, 4
      %v587 = vpop.permute.xlu0 %586
      %588 = vrot.lane.b32.xlu0 %v511, 4
      %v589 = vpop.permute.xlu0 %588
      %590 = vrot.lane.b32.xlu0 %v514, 4
      %v591 = vpop.permute.xlu0 %590
      %592 = vrot.lane.b32.xlu0 %v516, 4
      %v593 = vpop.permute.xlu0 %592
      %594 = vrot.lane.b32.xlu0 %v519, 4
      %v595 = vpop.permute.xlu0 %594
      %596 = vrot.lane.b32.xlu0 %v521, 4
      %v597 = vpop.permute.xlu0 %596
      %598 = vrot.lane.b32.xlu0 %v524, 4
      %v599 = vpop.permute.xlu0 %598
      %600 = vrot.lane.b32.xlu0 %v526, 4
      %v601 = vpop.permute.xlu0 %600
      %602 = vrot.lane.b32.xlu0 %v529, 4
      %v603 = vpop.permute.xlu0 %602
      %604 = vrot.lane.b32.xlu0 %v531, 4
      %v605 = vpop.permute.xlu0 %604
      %606 = vrot.lane.b32.xlu0 %v534, 4
      %v607 = vpop.permute.xlu0 %606
      %608 = vrot.lane.b32.xlu0 %v536, 4
      %v609 = vpop.permute.xlu0 %608
      %610 = vrot.lane.b32.xlu0 %v539, 4
      %v611 = vpop.permute.xlu0 %610
      %612 = vrot.lane.b32.xlu0 %v541, 4
      %v613 = vpop.permute.xlu0 %612
      %614 = vrot.lane.b32.xlu0 %v544, 4
      %v615 = vpop.permute.xlu0 %614
      %616 = vrot.lane.b32.xlu0 %v546, 4
      %v617 = vpop.permute.xlu0 %616
      %618 = vrot.lane.b32.xlu0 %v549, 4
      %v619 = vpop.permute.xlu0 %618
      %620 = vrot.lane.b32.xlu0 %v551, 4
      %v621 = vpop.permute.xlu0 %620
      %622 = vrot.lane.b32.xlu0 %v554, 4
      %v623 = vpop.permute.xlu0 %622
      %624 = vrot.lane.b32.xlu0 %v556, 4
      %v625 = vpop.permute.xlu0 %624
      %626 = vrot.lane.b32.xlu0 %v559, 4
      %v627 = vpop.permute.xlu0 %626
      %628 = vrot.lane.b32.xlu0 %v561, 4
      %v629 = vpop.permute.xlu0 %628
      %630 = vrot.lane.b32.xlu0 %v564, 4
      %v631 = vpop.permute.xlu0 %630
      %632 = vrot.lane.b32.xlu0 %v566, 4
      %v633 = vpop.permute.xlu0 %632
      %634 = vrot.lane.b32.xlu0 %v569, 4
      %v635 = vpop.permute.xlu0 %634
      %636 = vrot.lane.b32.xlu0 %v571, 4
      %v637 = vpop.permute.xlu0 %636
      %638 = vrot.lane.b32.xlu0 %v574, 4
      %v639 = vpop.permute.xlu0 %638
      %640 = vrot.lane.b32.xlu0 %v576, 4
      %v641 = vpop.permute.xlu0 %640
      %642 = vrot.lane.b32.xlu0 %v579, 4
      %v643 = vpop.permute.xlu0 %642
      %644 = vrot.lane.b32.xlu0 %v581, 4
      %v645 = vpop.permute.xlu0 %644
      %vm678 = vcmask 1045504
      %v679 = vrot.slane %v399, 2
      %v680 = vrot.slane %v400, 2
      %v681 = vsel %vm678, %v679, %v680
      %v682 = vrot.slane %v401, 2
      %v683 = vsel %vm678, %v680, %v682
      %v684 = vrot.slane %v402, 2
      %v685 = vrot.slane %v403, 2
      %v686 = vsel %vm678, %v684, %v685
      %v687 = vrot.slane %v404, 2
      %v688 = vsel %vm678, %v685, %v687
      %v689 = vrot.slane %v405, 2
      %v690 = vrot.slane %v406, 2
      %v691 = vsel %vm678, %v689, %v690
      %v692 = vrot.slane %v407, 2
      %v693 = vsel %vm678, %v690, %v692
      %v694 = vrot.slane %v408, 2
      %v695 = vrot.slane %v409, 2
      %v696 = vsel %vm678, %v694, %v695
      %v697 = vrot.slane %v410, 2
      %v698 = vsel %vm678, %v695, %v697
      %v699 = vrot.slane %v411, 2
      %v700 = vrot.slane %v412, 2
      %v701 = vsel %vm678, %v699, %v700
      %v702 = vrot.slane %v413, 2
      %v703 = vsel %vm678, %v700, %v702
      %v704 = vrot.slane %v414, 2
      %v705 = vrot.slane %v415, 2
      %v706 = vsel %vm678, %v704, %v705
      %v707 = vrot.slane %v416, 2
      %v708 = vsel %vm678, %v705, %v707
      %v709 = vrot.slane %v417, 2
      %v710 = vrot.slane %v418, 2
      %v711 = vsel %vm678, %v709, %v710
      %v712 = vrot.slane %v419, 2
      %v713 = vsel %vm678, %v710, %v712
      %v714 = vrot.slane %v420, 2
      %v715 = vrot.slane %v421, 2
      %v716 = vsel %vm678, %v714, %v715
      %v717 = vrot.slane %v422, 2
      %v718 = vsel %vm678, %v715, %v717
      %v719 = vrot.slane %v423, 2
      %v720 = vrot.slane %v424, 2
      %v721 = vsel %vm678, %v719, %v720
      %v722 = vrot.slane %v425, 2
      %v723 = vsel %vm678, %v720, %v722
      %v724 = vrot.slane %v426, 2
      %v725 = vrot.slane %v427, 2
      %v726 = vsel %vm678, %v724, %v725
      %v727 = vrot.slane %v428, 2
      %v728 = vsel %vm678, %v725, %v727
      %v729 = vrot.slane %v429, 2
      %v730 = vrot.slane %v430, 2
      %v731 = vsel %vm678, %v729, %v730
      %v732 = vrot.slane %v431, 2
      %v733 = vsel %vm678, %v730, %v732
      %v734 = vrot.slane %v432, 2
      %v735 = vrot.slane %v433, 2
      %v736 = vsel %vm678, %v734, %v735
      %v737 = vrot.slane %v434, 2
      %v738 = vsel %vm678, %v735, %v737
      %v739 = vrot.slane %v435, 2
      %v740 = vrot.slane %v436, 2
      %v741 = vsel %vm678, %v739, %v740
      %v742 = vrot.slane %v437, 2
      %v743 = vsel %vm678, %v740, %v742
      %v744 = vrot.slane %v438, 2
      %v745 = vrot.slane %v439, 2
      %v746 = vsel %vm678, %v744, %v745
      %v747 = vrot.slane %v440, 2
      %v748 = vsel %vm678, %v745, %v747
      %v749 = vrot.slane %v441, 2
      %v750 = vrot.slane %v442, 2
      %v751 = vsel %vm678, %v749, %v750
      %v752 = vrot.slane %v443, 2
      %v753 = vsel %vm678, %v750, %v752
      %v754 = vrot.slane %v444, 2
      %v755 = vrot.slane %v445, 2
      %v756 = vsel %vm678, %v754, %v755
      %v757 = vrot.slane %v446, 2
      %v758 = vsel %vm678, %v755, %v757
      %759 = vrot.lane.b32.xlu0 %v681, 8
      %v760 = vpop.permute.xlu0 %759
      %761 = vrot.lane.b32.xlu0 %v683, 8
      %v762 = vpop.permute.xlu0 %761
      %763 = vrot.lane.b32.xlu0 %v686, 8
      %v764 = vpop.permute.xlu0 %763
      %765 = vrot.lane.b32.xlu0 %v688, 8
      %v766 = vpop.permute.xlu0 %765
      %767 = vrot.lane.b32.xlu0 %v691, 8
      %v768 = vpop.permute.xlu0 %767
      %769 = vrot.lane.b32.xlu0 %v693, 8
      %v770 = vpop.permute.xlu0 %769
      %771 = vrot.lane.b32.xlu0 %v696, 8
      %v772 = vpop.permute.xlu0 %771
      %773 = vrot.lane.b32.xlu0 %v698, 8
      %v774 = vpop.permute.xlu0 %773
      %775 = vrot.lane.b32.xlu0 %v701, 8
      %v776 = vpop.permute.xlu0 %775
      %777 = vrot.lane.b32.xlu0 %v703, 8
      %v778 = vpop.permute.xlu0 %777
      %779 = vrot.lane.b32.xlu0 %v706, 8
      %v780 = vpop.permute.xlu0 %779
      %781 = vrot.lane.b32.xlu0 %v708, 8
      %v782 = vpop.permute.xlu0 %781
      %783 = vrot.lane.b32.xlu0 %v711, 8
      %v784 = vpop.permute.xlu0 %783
      %785 = vrot.lane.b32.xlu0 %v713, 8
      %v786 = vpop.permute.xlu0 %785
      %787 = vrot.lane.b32.xlu0 %v716, 8
      %v788 = vpop.permute.xlu0 %787
      %789 = vrot.lane.b32.xlu0 %v718, 8
      %v790 = vpop.permute.xlu0 %789
      %791 = vrot.lane.b32.xlu0 %v721, 8
      %v792 = vpop.permute.xlu0 %791
      %793 = vrot.lane.b32.xlu0 %v723, 8
      %v794 = vpop.permute.xlu0 %793
      %795 = vrot.lane.b32.xlu0 %v726, 8
      %v796 = vpop.permute.xlu0 %795
      %797 = vrot.lane.b32.xlu0 %v728, 8
      %v798 = vpop.permute.xlu0 %797
      %799 = vrot.lane.b32.xlu0 %v731, 8
      %v800 = vpop.permute.xlu0 %799
      %801 = vrot.lane.b32.xlu0 %v733, 8
      %v802 = vpop.permute.xlu0 %801
      %803 = vrot.lane.b32.xlu0 %v736, 8
      %v804 = vpop.permute.xlu0 %803
      %805 = vrot.lane.b32.xlu0 %v738, 8
      %v806 = vpop.permute.xlu0 %805
      %807 = vrot.lane.b32.xlu0 %v741, 8
      %v808 = vpop.permute.xlu0 %807
      %809 = vrot.lane.b32.xlu0 %v743, 8
      %v810 = vpop.permute.xlu0 %809
      %811 = vrot.lane.b32.xlu0 %v746, 8
      %v812 = vpop.permute.xlu0 %811
      %813 = vrot.lane.b32.xlu0 %v748, 8
      %v814 = vpop.permute.xlu0 %813
      %815 = vrot.lane.b32.xlu0 %v751, 8
      %v816 = vpop.permute.xlu0 %815
      %817 = vrot.lane.b32.xlu0 %v753, 8
      %v818 = vpop.permute.xlu0 %817
      %819 = vrot.lane.b32.xlu0 %v756, 8
      %v820 = vpop.permute.xlu0 %819
      %821 = vrot.lane.b32.xlu0 %v758, 8
      %v822 = vpop.permute.xlu0 %821
      %857 = vrot.lane.b32.xlu0 %v402, 12
      %v858 = vpop.permute.xlu0 %857
      %859 = vrot.lane.b32.xlu0 %v403, 12
      %v860 = vpop.permute.xlu0 %859
      %861 = vrot.lane.b32.xlu0 %v405, 12
      %v862 = vpop.permute.xlu0 %861
      %863 = vrot.lane.b32.xlu0 %v406, 12
      %v864 = vpop.permute.xlu0 %863
      %865 = vrot.lane.b32.xlu0 %v408, 12
      %v866 = vpop.permute.xlu0 %865
      %867 = vrot.lane.b32.xlu0 %v409, 12
      %v868 = vpop.permute.xlu0 %867
      %869 = vrot.lane.b32.xlu0 %v411, 12
      %v870 = vpop.permute.xlu0 %869
      %871 = vrot.lane.b32.xlu0 %v412, 12
      %v872 = vpop.permute.xlu0 %871
      %873 = vrot.lane.b32.xlu0 %v414, 12
      %v874 = vpop.permute.xlu0 %873
      %875 = vrot.lane.b32.xlu0 %v415, 12
      %v876 = vpop.permute.xlu0 %875
      %877 = vrot.lane.b32.xlu0 %v417, 12
      %v878 = vpop.permute.xlu0 %877
      %879 = vrot.lane.b32.xlu0 %v418, 12
      %v880 = vpop.permute.xlu0 %879
      %881 = vrot.lane.b32.xlu0 %v420, 12
      %v882 = vpop.permute.xlu0 %881
      %883 = vrot.lane.b32.xlu0 %v421, 12
      %v884 = vpop.permute.xlu0 %883
      %885 = vrot.lane.b32.xlu0 %v423, 12
      %v886 = vpop.permute.xlu0 %885
      %887 = vrot.lane.b32.xlu0 %v424, 12
      %v888 = vpop.permute.xlu0 %887
      %889 = vrot.lane.b32.xlu0 %v426, 12
      %v890 = vpop.permute.xlu0 %889
      %891 = vrot.lane.b32.xlu0 %v427, 12
      %v892 = vpop.permute.xlu0 %891
      %893 = vrot.lane.b32.xlu0 %v429, 12
      %v894 = vpop.permute.xlu0 %893
      %895 = vrot.lane.b32.xlu0 %v430, 12
      %v896 = vpop.permute.xlu0 %895
      %897 = vrot.lane.b32.xlu0 %v432, 12
      %v898 = vpop.permute.xlu0 %897
      %899 = vrot.lane.b32.xlu0 %v433, 12
      %v900 = vpop.permute.xlu0 %899
      %901 = vrot.lane.b32.xlu0 %v435, 12
      %v902 = vpop.permute.xlu0 %901
      %903 = vrot.lane.b32.xlu0 %v436, 12
      %v904 = vpop.permute.xlu0 %903
      %905 = vrot.lane.b32.xlu0 %v438, 12
      %v906 = vpop.permute.xlu0 %905
      %907 = vrot.lane.b32.xlu0 %v439, 12
      %v908 = vpop.permute.xlu0 %907
      %909 = vrot.lane.b32.xlu0 %v441, 12
      %v910 = vpop.permute.xlu0 %909
      %911 = vrot.lane.b32.xlu0 %v442, 12
      %v912 = vpop.permute.xlu0 %911
      %913 = vrot.lane.b32.xlu0 %v444, 12
      %v914 = vpop.permute.xlu0 %913
      %915 = vrot.lane.b32.xlu0 %v445, 12
      %v916 = vpop.permute.xlu0 %915
      %917 = vrot.lane.b32.xlu0 %v447, 12
      %v918 = vpop.permute.xlu0 %917
      %919 = vrot.lane.b32.xlu0 %v448, 12
      %v920 = vpop.permute.xlu0 %919
      %v954 = vrot.slane %v447, 1
      %v955 = vrot.slane %v448, 1
      %v956 = vsel %vm501, %v954, %v955
      %v957 = vrot.slane %v449, 1
      %v958 = vsel %vm501, %v955, %v957
      %959 = vrot.lane.b32.xlu0 %v509, 16
      %v960 = vpop.permute.xlu0 %959
      %961 = vrot.lane.b32.xlu0 %v511, 16
      %v962 = vpop.permute.xlu0 %961
      %963 = vrot.lane.b32.xlu0 %v514, 16
      %v964 = vpop.permute.xlu0 %963
      %965 = vrot.lane.b32.xlu0 %v516, 16
      %v966 = vpop.permute.xlu0 %965
      %967 = vrot.lane.b32.xlu0 %v519, 16
      %v968 = vpop.permute.xlu0 %967
      %969 = vrot.lane.b32.xlu0 %v521, 16
      %v970 = vpop.permute.xlu0 %969
      %971 = vrot.lane.b32.xlu0 %v524, 16
      %v972 = vpop.permute.xlu0 %971
      %973 = vrot.lane.b32.xlu0 %v526, 16
      %v974 = vpop.permute.xlu0 %973
      %975 = vrot.lane.b32.xlu0 %v529, 16
      %v976 = vpop.permute.xlu0 %975
      %977 = vrot.lane.b32.xlu0 %v531, 16
      %v978 = vpop.permute.xlu0 %977
      %979 = vrot.lane.b32.xlu0 %v534, 16
      %v980 = vpop.permute.xlu0 %979
      %981 = vrot.lane.b32.xlu0 %v536, 16
      %v982 = vpop.permute.xlu0 %981
      %983 = vrot.lane.b32.xlu0 %v539, 16
      %v984 = vpop.permute.xlu0 %983
      %985 = vrot.lane.b32.xlu0 %v541, 16
      %v986 = vpop.permute.xlu0 %985
      %987 = vrot.lane.b32.xlu0 %v544, 16
      %v988 = vpop.permute.xlu0 %987
      %989 = vrot.lane.b32.xlu0 %v546, 16
      %v990 = vpop.permute.xlu0 %989
      %991 = vrot.lane.b32.xlu0 %v549, 16
      %v992 = vpop.permute.xlu0 %991
      %993 = vrot.lane.b32.xlu0 %v551, 16
      %v994 = vpop.permute.xlu0 %993
      %995 = vrot.lane.b32.xlu0 %v554, 16
      %v996 = vpop.permute.xlu0 %995
      %997 = vrot.lane.b32.xlu0 %v556, 16
      %v998 = vpop.permute.xlu0 %997
      %999 = vrot.lane.b32.xlu0 %v559, 16
      %v1000 = vpop.permute.xlu0 %999
      %1001 = vrot.lane.b32.xlu0 %v561, 16
      %v1002 = vpop.permute.xlu0 %1001
      %1003 = vrot.lane.b32.xlu0 %v564, 16
      %v1004 = vpop.permute.xlu0 %1003
      %1005 = vrot.lane.b32.xlu0 %v566, 16
      %v1006 = vpop.permute.xlu0 %1005
      %1007 = vrot.lane.b32.xlu0 %v569, 16
      %v1008 = vpop.permute.xlu0 %1007
      %1009 = vrot.lane.b32.xlu0 %v571, 16
      %v1010 = vpop.permute.xlu0 %1009
      %1011 = vrot.lane.b32.xlu0 %v574, 16
      %v1012 = vpop.permute.xlu0 %1011
      %1013 = vrot.lane.b32.xlu0 %v576, 16
      %v1014 = vpop.permute.xlu0 %1013
      %1015 = vrot.lane.b32.xlu0 %v579, 16
      %v1016 = vpop.permute.xlu0 %1015
      %1017 = vrot.lane.b32.xlu0 %v581, 16
      %v1018 = vpop.permute.xlu0 %1017
      %1019 = vrot.lane.b32.xlu0 %v956, 16
      %v1020 = vpop.permute.xlu0 %1019
      %1021 = vrot.lane.b32.xlu0 %v958, 16
      %v1022 = vpop.permute.xlu0 %1021
      %v1055 = vrot.slane %v447, 2
      %v1056 = vrot.slane %v448, 2
      %v1057 = vsel %vm678, %v1055, %v1056
      %v1058 = vrot.slane %v449, 2
      %v1059 = vsel %vm678, %v1056, %v1058
      %1060 = vrot.lane.b32.xlu0 %v686, 20
      %v1061 = vpop.permute.xlu0 %1060
      %1062 = vrot.lane.b32.xlu0 %v688, 20
      %v1063 = vpop.permute.xlu0 %1062
      %1064 = vrot.lane.b32.xlu0 %v691, 20
      %v1065 = vpop.permute.xlu0 %1064
      %1066 = vrot.lane.b32.xlu0 %v693, 20
      %v1067 = vpop.permute.xlu0 %1066
      %1068 = vrot.lane.b32.xlu0 %v696, 20
      %v1069 = vpop.permute.xlu0 %1068
      %1070 = vrot.lane.b32.xlu0 %v698, 20
      %v1071 = vpop.permute.xlu0 %1070
      %1072 = vrot.lane.b32.xlu0 %v701, 20
      %v1073 = vpop.permute.xlu0 %1072
      %1074 = vrot.lane.b32.xlu0 %v703, 20
      %v1075 = vpop.permute.xlu0 %1074
      %1076 = vrot.lane.b32.xlu0 %v706, 20
      %v1077 = vpop.permute.xlu0 %1076
      %1078 = vrot.lane.b32.xlu0 %v708, 20
      %v1079 = vpop.permute.xlu0 %1078
      %1080 = vrot.lane.b32.xlu0 %v711, 20
      %v1081 = vpop.permute.xlu0 %1080
      %1082 = vrot.lane.b32.xlu0 %v713, 20
      %v1083 = vpop.permute.xlu0 %1082
      %1084 = vrot.lane.b32.xlu0 %v716, 20
      %v1085 = vpop.permute.xlu0 %1084
      %1086 = vrot.lane.b32.xlu0 %v718, 20
      %v1087 = vpop.permute.xlu0 %1086
      %1088 = vrot.lane.b32.xlu0 %v721, 20
      %v1089 = vpop.permute.xlu0 %1088
      %1090 = vrot.lane.b32.xlu0 %v723, 20
      %v1091 = vpop.permute.xlu0 %1090
      %1092 = vrot.lane.b32.xlu0 %v726, 20
      %v1093 = vpop.permute.xlu0 %1092
      %1094 = vrot.lane.b32.xlu0 %v728, 20
      %v1095 = vpop.permute.xlu0 %1094
      %1096 = vrot.lane.b32.xlu0 %v731, 20
      %v1097 = vpop.permute.xlu0 %1096
      %1098 = vrot.lane.b32.xlu0 %v733, 20
      %v1099 = vpop.permute.xlu0 %1098
      %1100 = vrot.lane.b32.xlu0 %v736, 20
      %v1101 = vpop.permute.xlu0 %1100
      %1102 = vrot.lane.b32.xlu0 %v738, 20
      %v1103 = vpop.permute.xlu0 %1102
      %1104 = vrot.lane.b32.xlu0 %v741, 20
      %v1105 = vpop.permute.xlu0 %1104
      %1106 = vrot.lane.b32.xlu0 %v743, 20
      %v1107 = vpop.permute.xlu0 %1106
      %1108 = vrot.lane.b32.xlu0 %v746, 20
      %v1109 = vpop.permute.xlu0 %1108
      %1110 = vrot.lane.b32.xlu0 %v748, 20
      %v1111 = vpop.permute.xlu0 %1110
      %1112 = vrot.lane.b32.xlu0 %v751, 20
      %v1113 = vpop.permute.xlu0 %1112
      %1114 = vrot.lane.b32.xlu0 %v753, 20
      %v1115 = vpop.permute.xlu0 %1114
      %1116 = vrot.lane.b32.xlu0 %v756, 20
      %v1117 = vpop.permute.xlu0 %1116
      %1118 = vrot.lane.b32.xlu0 %v758, 20
      %v1119 = vpop.permute.xlu0 %1118
      %1120 = vrot.lane.b32.xlu0 %v1057, 20
      %v1121 = vpop.permute.xlu0 %1120
      %1122 = vrot.lane.b32.xlu0 %v1059, 20
      %v1123 = vpop.permute.xlu0 %1122
      %1158 = vrot.lane.b32.xlu0 %v405, 24
      %v1159 = vpop.permute.xlu0 %1158
      %1160 = vrot.lane.b32.xlu0 %v406, 24
      %v1161 = vpop.permute.xlu0 %1160
      %1162 = vrot.lane.b32.xlu0 %v408, 24
      %v1163 = vpop.permute.xlu0 %1162
      %1164 = vrot.lane.b32.xlu0 %v409, 24
      %v1165 = vpop.permute.xlu0 %1164
      %1166 = vrot.lane.b32.xlu0 %v411, 24
      %v1167 = vpop.permute.xlu0 %1166
      %1168 = vrot.lane.b32.xlu0 %v412, 24
      %v1169 = vpop.permute.xlu0 %1168
      %1170 = vrot.lane.b32.xlu0 %v414, 24
      %v1171 = vpop.permute.xlu0 %1170
      %1172 = vrot.lane.b32.xlu0 %v415, 24
      %v1173 = vpop.permute.xlu0 %1172
      %1174 = vrot.lane.b32.xlu0 %v417, 24
      %v1175 = vpop.permute.xlu0 %1174
      %1176 = vrot.lane.b32.xlu0 %v418, 24
      %v1177 = vpop.permute.xlu0 %1176
      %1178 = vrot.lane.b32.xlu0 %v420, 24
      %v1179 = vpop.permute.xlu0 %1178
      %1180 = vrot.lane.b32.xlu0 %v421, 24
      %v1181 = vpop.permute.xlu0 %1180
      %1182 = vrot.lane.b32.xlu0 %v423, 24
      %v1183 = vpop.permute.xlu0 %1182
      %1184 = vrot.lane.b32.xlu0 %v424, 24
      %v1185 = vpop.permute.xlu0 %1184
      %1186 = vrot.lane.b32.xlu0 %v426, 24
      %v1187 = vpop.permute.xlu0 %1186
      %1188 = vrot.lane.b32.xlu0 %v427, 24
      %v1189 = vpop.permute.xlu0 %1188
      %1190 = vrot.lane.b32.xlu0 %v429, 24
      %v1191 = vpop.permute.xlu0 %1190
      %1192 = vrot.lane.b32.xlu0 %v430, 24
      %v1193 = vpop.permute.xlu0 %1192
      %1194 = vrot.lane.b32.xlu0 %v432, 24
      %v1195 = vpop.permute.xlu0 %1194
      %1196 = vrot.lane.b32.xlu0 %v433, 24
      %v1197 = vpop.permute.xlu0 %1196
      %1198 = vrot.lane.b32.xlu0 %v435, 24
      %v1199 = vpop.permute.xlu0 %1198
      %1200 = vrot.lane.b32.xlu0 %v436, 24
      %v1201 = vpop.permute.xlu0 %1200
      %1202 = vrot.lane.b32.xlu0 %v438, 24
      %v1203 = vpop.permute.xlu0 %1202
      %1204 = vrot.lane.b32.xlu0 %v439, 24
      %v1205 = vpop.permute.xlu0 %1204
      %1206 = vrot.lane.b32.xlu0 %v441, 24
      %v1207 = vpop.permute.xlu0 %1206
      %1208 = vrot.lane.b32.xlu0 %v442, 24
      %v1209 = vpop.permute.xlu0 %1208
      %1210 = vrot.lane.b32.xlu0 %v444, 24
      %v1211 = vpop.permute.xlu0 %1210
      %1212 = vrot.lane.b32.xlu0 %v445, 24
      %v1213 = vpop.permute.xlu0 %1212
      %1214 = vrot.lane.b32.xlu0 %v447, 24
      %v1215 = vpop.permute.xlu0 %1214
      %1216 = vrot.lane.b32.xlu0 %v448, 24
      %v1217 = vpop.permute.xlu0 %1216
      %1218 = vrot.lane.b32.xlu0 %v450, 24
      %v1219 = vpop.permute.xlu0 %1218
      %1220 = vrot.lane.b32.xlu0 %v451, 24
      %v1221 = vpop.permute.xlu0 %1220
      %v1255 = vrot.slane %v450, 1
      %v1256 = vrot.slane %v451, 1
      %v1257 = vsel %vm501, %v1255, %v1256
      %v1258 = vrot.slane %v452, 1
      %v1259 = vsel %vm501, %v1256, %v1258
      %1260 = vrot.lane.b32.xlu0 %v514, 28
      %v1261 = vpop.permute.xlu0 %1260
      %1262 = vrot.lane.b32.xlu0 %v516, 28
      %v1263 = vpop.permute.xlu0 %1262
      %1264 = vrot.lane.b32.xlu0 %v519, 28
      %v1265 = vpop.permute.xlu0 %1264
      %1266 = vrot.lane.b32.xlu0 %v521, 28
      %v1267 = vpop.permute.xlu0 %1266
      %1268 = vrot.lane.b32.xlu0 %v524, 28
      %v1269 = vpop.permute.xlu0 %1268
      %1270 = vrot.lane.b32.xlu0 %v526, 28
      %v1271 = vpop.permute.xlu0 %1270
      %1272 = vrot.lane.b32.xlu0 %v529, 28
      %v1273 = vpop.permute.xlu0 %1272
      %1274 = vrot.lane.b32.xlu0 %v531, 28
      %v1275 = vpop.permute.xlu0 %1274
      %1276 = vrot.lane.b32.xlu0 %v534, 28
      %v1277 = vpop.permute.xlu0 %1276
      %1278 = vrot.lane.b32.xlu0 %v536, 28
      %v1279 = vpop.permute.xlu0 %1278
      %1280 = vrot.lane.b32.xlu0 %v539, 28
      %v1281 = vpop.permute.xlu0 %1280
      %1282 = vrot.lane.b32.xlu0 %v541, 28
      %v1283 = vpop.permute.xlu0 %1282
      %1284 = vrot.lane.b32.xlu0 %v544, 28
      %v1285 = vpop.permute.xlu0 %1284
      %1286 = vrot.lane.b32.xlu0 %v546, 28
      %v1287 = vpop.permute.xlu0 %1286
      %1288 = vrot.lane.b32.xlu0 %v549, 28
      %v1289 = vpop.permute.xlu0 %1288
      %1290 = vrot.lane.b32.xlu0 %v551, 28
      %v1291 = vpop.permute.xlu0 %1290
      %1292 = vrot.lane.b32.xlu0 %v554, 28
      %v1293 = vpop.permute.xlu0 %1292
      %1294 = vrot.lane.b32.xlu0 %v556, 28
      %v1295 = vpop.permute.xlu0 %1294
      %1296 = vrot.lane.b32.xlu0 %v559, 28
      %v1297 = vpop.permute.xlu0 %1296
      %1298 = vrot.lane.b32.xlu0 %v561, 28
      %v1299 = vpop.permute.xlu0 %1298
      %1300 = vrot.lane.b32.xlu0 %v564, 28
      %v1301 = vpop.permute.xlu0 %1300
      %1302 = vrot.lane.b32.xlu0 %v566, 28
      %v1303 = vpop.permute.xlu0 %1302
      %1304 = vrot.lane.b32.xlu0 %v569, 28
      %v1305 = vpop.permute.xlu0 %1304
      %1306 = vrot.lane.b32.xlu0 %v571, 28
      %v1307 = vpop.permute.xlu0 %1306
      %1308 = vrot.lane.b32.xlu0 %v574, 28
      %v1309 = vpop.permute.xlu0 %1308
      %1310 = vrot.lane.b32.xlu0 %v576, 28
      %v1311 = vpop.permute.xlu0 %1310
      %1312 = vrot.lane.b32.xlu0 %v579, 28
      %v1313 = vpop.permute.xlu0 %1312
      %1314 = vrot.lane.b32.xlu0 %v581, 28
      %v1315 = vpop.permute.xlu0 %1314
      %1316 = vrot.lane.b32.xlu0 %v956, 28
      %v1317 = vpop.permute.xlu0 %1316
      %1318 = vrot.lane.b32.xlu0 %v958, 28
      %v1319 = vpop.permute.xlu0 %1318
      %1320 = vrot.lane.b32.xlu0 %v1257, 28
      %v1321 = vpop.permute.xlu0 %1320
      %1322 = vrot.lane.b32.xlu0 %v1259, 28
      %v1323 = vpop.permute.xlu0 %1322
      %v1356 = vrot.slane %v450, 2
      %v1357 = vrot.slane %v451, 2
      %v1358 = vsel %vm678, %v1356, %v1357
      %v1359 = vrot.slane %v452, 2
      %v1360 = vsel %vm678, %v1357, %v1359
      %1361 = vrot.lane.b32.xlu0 %v691, 32
      %v1362 = vpop.permute.xlu0 %1361
      %1363 = vrot.lane.b32.xlu0 %v693, 32
      %v1364 = vpop.permute.xlu0 %1363
      %1365 = vrot.lane.b32.xlu0 %v696, 32
      %v1366 = vpop.permute.xlu0 %1365
      %1367 = vrot.lane.b32.xlu0 %v698, 32
      %v1368 = vpop.permute.xlu0 %1367
      %1369 = vrot.lane.b32.xlu0 %v701, 32
      %v1370 = vpop.permute.xlu0 %1369
      %1371 = vrot.lane.b32.xlu0 %v703, 32
      %v1372 = vpop.permute.xlu0 %1371
      %1373 = vrot.lane.b32.xlu0 %v706, 32
      %v1374 = vpop.permute.xlu0 %1373
      %1375 = vrot.lane.b32.xlu0 %v708, 32
      %v1376 = vpop.permute.xlu0 %1375
      %1377 = vrot.lane.b32.xlu0 %v711, 32
      %v1378 = vpop.permute.xlu0 %1377
      %1379 = vrot.lane.b32.xlu0 %v713, 32
      %v1380 = vpop.permute.xlu0 %1379
      %1381 = vrot.lane.b32.xlu0 %v716, 32
      %v1382 = vpop.permute.xlu0 %1381
      %1383 = vrot.lane.b32.xlu0 %v718, 32
      %v1384 = vpop.permute.xlu0 %1383
      %1385 = vrot.lane.b32.xlu0 %v721, 32
      %v1386 = vpop.permute.xlu0 %1385
      %1387 = vrot.lane.b32.xlu0 %v723, 32
      %v1388 = vpop.permute.xlu0 %1387
      %1389 = vrot.lane.b32.xlu0 %v726, 32
      %v1390 = vpop.permute.xlu0 %1389
      %1391 = vrot.lane.b32.xlu0 %v728, 32
      %v1392 = vpop.permute.xlu0 %1391
      %1393 = vrot.lane.b32.xlu0 %v731, 32
      %v1394 = vpop.permute.xlu0 %1393
      %1395 = vrot.lane.b32.xlu0 %v733, 32
      %v1396 = vpop.permute.xlu0 %1395
      %1397 = vrot.lane.b32.xlu0 %v736, 32
      %v1398 = vpop.permute.xlu0 %1397
      %1399 = vrot.lane.b32.xlu0 %v738, 32
      %v1400 = vpop.permute.xlu0 %1399
      %1401 = vrot.lane.b32.xlu0 %v741, 32
      %v1402 = vpop.permute.xlu0 %1401
      %1403 = vrot.lane.b32.xlu0 %v743, 32
      %v1404 = vpop.permute.xlu0 %1403
      %1405 = vrot.lane.b32.xlu0 %v746, 32
      %v1406 = vpop.permute.xlu0 %1405
      %1407 = vrot.lane.b32.xlu0 %v748, 32
      %v1408 = vpop.permute.xlu0 %1407
      %1409 = vrot.lane.b32.xlu0 %v751, 32
      %v1410 = vpop.permute.xlu0 %1409
      %1411 = vrot.lane.b32.xlu0 %v753, 32
      %v1412 = vpop.permute.xlu0 %1411
      %1413 = vrot.lane.b32.xlu0 %v756, 32
      %v1414 = vpop.permute.xlu0 %1413
      %1415 = vrot.lane.b32.xlu0 %v758, 32
      %v1416 = vpop.permute.xlu0 %1415
      %1417 = vrot.lane.b32.xlu0 %v1057, 32
      %v1418 = vpop.permute.xlu0 %1417
      %1419 = vrot.lane.b32.xlu0 %v1059, 32
      %v1420 = vpop.permute.xlu0 %1419
      %1421 = vrot.lane.b32.xlu0 %v1358, 32
      %v1422 = vpop.permute.xlu0 %1421
      %1423 = vrot.lane.b32.xlu0 %v1360, 32
      %v1424 = vpop.permute.xlu0 %1423
      %v1457 = vsel %vm246, %v399, %v583
      %v1458 = vsel %vm246, %v400, %v585
      %v1459 = vsel %vm246, %v402, %v587
      %v1460 = vsel %vm246, %v403, %v589
      %v1461 = vsel %vm246, %v405, %v591
      %v1462 = vsel %vm246, %v406, %v593
      %v1463 = vsel %vm246, %v408, %v595
      %v1464 = vsel %vm246, %v409, %v597
      %v1465 = vsel %vm246, %v411, %v599
      %v1466 = vsel %vm246, %v412, %v601
      %v1467 = vsel %vm246, %v414, %v603
      %v1468 = vsel %vm246, %v415, %v605
      %v1469 = vsel %vm246, %v417, %v607
      %v1470 = vsel %vm246, %v418, %v609
      %v1471 = vsel %vm246, %v420, %v611
      %v1472 = vsel %vm246, %v421, %v613
      %v1473 = vsel %vm246, %v423, %v615
      %v1474 = vsel %vm246, %v424, %v617
      %v1475 = vsel %vm246, %v426, %v619
      %v1476 = vsel %vm246, %v427, %v621
      %v1477 = vsel %vm246, %v429, %v623
      %v1478 = vsel %vm246, %v430, %v625
      %v1479 = vsel %vm246, %v432, %v627
      %v1480 = vsel %vm246, %v433, %v629
      %v1481 = vsel %vm246, %v435, %v631
      %v1482 = vsel %vm246, %v436, %v633
      %v1483 = vsel %vm246, %v438, %v635
      %v1484 = vsel %vm246, %v439, %v637
      %v1485 = vsel %vm246, %v441, %v639
      %v1486 = vsel %vm246, %v442, %v641
      %v1487 = vsel %vm246, %v444, %v643
      %v1488 = vsel %vm246, %v445, %v645
      %vm1489 = vcmask 64512
      %v1490 = vsel %vm1489, %v1457, %v760
      %v1491 = vsel %vm1489, %v1458, %v762
      %v1492 = vsel %vm1489, %v1459, %v764
      %v1493 = vsel %vm1489, %v1460, %v766
      %v1494 = vsel %vm1489, %v1461, %v768
      %v1495 = vsel %vm1489, %v1462, %v770
      %v1496 = vsel %vm1489, %v1463, %v772
      %v1497 = vsel %vm1489, %v1464, %v774
      %v1498 = vsel %vm1489, %v1465, %v776
      %v1499 = vsel %vm1489, %v1466, %v778
      %v1500 = vsel %vm1489, %v1467, %v780
      %v1501 = vsel %vm1489, %v1468, %v782
      %v1502 = vsel %vm1489, %v1469, %v784
      %v1503 = vsel %vm1489, %v1470, %v786
      %v1504 = vsel %vm1489, %v1471, %v788
      %v1505 = vsel %vm1489, %v1472, %v790
      %v1506 = vsel %vm1489, %v1473, %v792
      %v1507 = vsel %vm1489, %v1474, %v794
      %v1508 = vsel %vm1489, %v1475, %v796
      %v1509 = vsel %vm1489, %v1476, %v798
      %v1510 = vsel %vm1489, %v1477, %v800
      %v1511 = vsel %vm1489, %v1478, %v802
      %v1512 = vsel %vm1489, %v1479, %v804
      %v1513 = vsel %vm1489, %v1480, %v806
      %v1514 = vsel %vm1489, %v1481, %v808
      %v1515 = vsel %vm1489, %v1482, %v810
      %v1516 = vsel %vm1489, %v1483, %v812
      %v1517 = vsel %vm1489, %v1484, %v814
      %v1518 = vsel %vm1489, %v1485, %v816
      %v1519 = vsel %vm1489, %v1486, %v818
      %v1520 = vsel %vm1489, %v1487, %v820
      %v1521 = vsel %vm1489, %v1488, %v822
      %vm1522 = vcmask 97280
      %v1523 = vsel %vm1522, %v1490, %v858
      %v1524 = vsel %vm1522, %v1491, %v860
      %v1525 = vsel %vm1522, %v1492, %v862
      %v1526 = vsel %vm1522, %v1493, %v864
      %v1527 = vsel %vm1522, %v1494, %v866
      %v1528 = vsel %vm1522, %v1495, %v868
      %v1529 = vsel %vm1522, %v1496, %v870
      %v1530 = vsel %vm1522, %v1497, %v872
      %v1531 = vsel %vm1522, %v1498, %v874
      %v1532 = vsel %vm1522, %v1499, %v876
      %v1533 = vsel %vm1522, %v1500, %v878
      %v1534 = vsel %vm1522, %v1501, %v880
      %v1535 = vsel %vm1522, %v1502, %v882
      %v1536 = vsel %vm1522, %v1503, %v884
      %v1537 = vsel %vm1522, %v1504, %v886
      %v1538 = vsel %vm1522, %v1505, %v888
      %v1539 = vsel %vm1522, %v1506, %v890
      %v1540 = vsel %vm1522, %v1507, %v892
      %v1541 = vsel %vm1522, %v1508, %v894
      %v1542 = vsel %vm1522, %v1509, %v896
      %v1543 = vsel %vm1522, %v1510, %v898
      %v1544 = vsel %vm1522, %v1511, %v900
      %v1545 = vsel %vm1522, %v1512, %v902
      %v1546 = vsel %vm1522, %v1513, %v904
      %v1547 = vsel %vm1522, %v1514, %v906
      %v1548 = vsel %vm1522, %v1515, %v908
      %v1549 = vsel %vm1522, %v1516, %v910
      %v1550 = vsel %vm1522, %v1517, %v912
      %v1551 = vsel %vm1522, %v1518, %v914
      %v1552 = vsel %vm1522, %v1519, %v916
      %v1553 = vsel %vm1522, %v1520, %v918
      %v1554 = vsel %vm1522, %v1521, %v920
      %vm1555 = vcmask 130048
      %v1556 = vsel %vm1555, %v1523, %v960
      %v1557 = vsel %vm1555, %v1524, %v962
      %v1558 = vsel %vm1555, %v1525, %v964
      %v1559 = vsel %vm1555, %v1526, %v966
      %v1560 = vsel %vm1555, %v1527, %v968
      %v1561 = vsel %vm1555, %v1528, %v970
      %v1562 = vsel %vm1555, %v1529, %v972
      %v1563 = vsel %vm1555, %v1530, %v974
      %v1564 = vsel %vm1555, %v1531, %v976
      %v1565 = vsel %vm1555, %v1532, %v978
      %v1566 = vsel %vm1555, %v1533, %v980
      %v1567 = vsel %vm1555, %v1534, %v982
      %v1568 = vsel %vm1555, %v1535, %v984
      %v1569 = vsel %vm1555, %v1536, %v986
      %v1570 = vsel %vm1555, %v1537, %v988
      %v1571 = vsel %vm1555, %v1538, %v990
      %v1572 = vsel %vm1555, %v1539, %v992
      %v1573 = vsel %vm1555, %v1540, %v994
      %v1574 = vsel %vm1555, %v1541, %v996
      %v1575 = vsel %vm1555, %v1542, %v998
      %v1576 = vsel %vm1555, %v1543, %v1000
      %v1577 = vsel %vm1555, %v1544, %v1002
      %v1578 = vsel %vm1555, %v1545, %v1004
      %v1579 = vsel %vm1555, %v1546, %v1006
      %v1580 = vsel %vm1555, %v1547, %v1008
      %v1581 = vsel %vm1555, %v1548, %v1010
      %v1582 = vsel %vm1555, %v1549, %v1012
      %v1583 = vsel %vm1555, %v1550, %v1014
      %v1584 = vsel %vm1555, %v1551, %v1016
      %v1585 = vsel %vm1555, %v1552, %v1018
      %v1586 = vsel %vm1555, %v1553, %v1020
      %v1587 = vsel %vm1555, %v1554, %v1022
      %vm1588 = vcmask 162816
      %v1589 = vsel %vm1588, %v1556, %v1061
      %v1590 = vsel %vm1588, %v1557, %v1063
      %v1591 = vsel %vm1588, %v1558, %v1065
      %v1592 = vsel %vm1588, %v1559, %v1067
      %v1593 = vsel %vm1588, %v1560, %v1069
      %v1594 = vsel %vm1588, %v1561, %v1071
      %v1595 = vsel %vm1588, %v1562, %v1073
      %v1596 = vsel %vm1588, %v1563, %v1075
      %v1597 = vsel %vm1588, %v1564, %v1077
      %v1598 = vsel %vm1588, %v1565, %v1079
      %v1599 = vsel %vm1588, %v1566, %v1081
      %v1600 = vsel %vm1588, %v1567, %v1083
      %v1601 = vsel %vm1588, %v1568, %v1085
      %v1602 = vsel %vm1588, %v1569, %v1087
      %v1603 = vsel %vm1588, %v1570, %v1089
      %v1604 = vsel %vm1588, %v1571, %v1091
      %v1605 = vsel %vm1588, %v1572, %v1093
      %v1606 = vsel %vm1588, %v1573, %v1095
      %v1607 = vsel %vm1588, %v1574, %v1097
      %v1608 = vsel %vm1588, %v1575, %v1099
      %v1609 = vsel %vm1588, %v1576, %v1101
      %v1610 = vsel %vm1588, %v1577, %v1103
      %v1611 = vsel %vm1588, %v1578, %v1105
      %v1612 = vsel %vm1588, %v1579, %v1107
      %v1613 = vsel %vm1588, %v1580, %v1109
      %v1614 = vsel %vm1588, %v1581, %v1111
      %v1615 = vsel %vm1588, %v1582, %v1113
      %v1616 = vsel %vm1588, %v1583, %v1115
      %v1617 = vsel %vm1588, %v1584, %v1117
      %v1618 = vsel %vm1588, %v1585, %v1119
      %v1619 = vsel %vm1588, %v1586, %v1121
      %v1620 = vsel %vm1588, %v1587, %v1123
      %vm1621 = vcmask 195584
      %v1622 = vsel %vm1621, %v1589, %v1159
      %v1623 = vsel %vm1621, %v1590, %v1161
      %v1624 = vsel %vm1621, %v1591, %v1163
      %v1625 = vsel %vm1621, %v1592, %v1165
      %v1626 = vsel %vm1621, %v1593, %v1167
      %v1627 = vsel %vm1621, %v1594, %v1169
      %v1628 = vsel %vm1621, %v1595, %v1171
      %v1629 = vsel %vm1621, %v1596, %v1173
      %v1630 = vsel %vm1621, %v1597, %v1175
      %v1631 = vsel %vm1621, %v1598, %v1177
      %v1632 = vsel %vm1621, %v1599, %v1179
      %v1633 = vsel %vm1621, %v1600, %v1181
      %v1634 = vsel %vm1621, %v1601, %v1183
      %v1635 = vsel %vm1621, %v1602, %v1185
      %v1636 = vsel %vm1621, %v1603, %v1187
      %v1637 = vsel %vm1621, %v1604, %v1189
      %v1638 = vsel %vm1621, %v1605, %v1191
      %v1639 = vsel %vm1621, %v1606, %v1193
      %v1640 = vsel %vm1621, %v1607, %v1195
      %v1641 = vsel %vm1621, %v1608, %v1197
      %v1642 = vsel %vm1621, %v1609, %v1199
      %v1643 = vsel %vm1621, %v1610, %v1201
      %v1644 = vsel %vm1621, %v1611, %v1203
      %v1645 = vsel %vm1621, %v1612, %v1205
      %v1646 = vsel %vm1621, %v1613, %v1207
      %v1647 = vsel %vm1621, %v1614, %v1209
      %v1648 = vsel %vm1621, %v1615, %v1211
      %v1649 = vsel %vm1621, %v1616, %v1213
      %v1650 = vsel %vm1621, %v1617, %v1215
      %v1651 = vsel %vm1621, %v1618, %v1217
      %v1652 = vsel %vm1621, %v1619, %v1219
      %v1653 = vsel %vm1621, %v1620, %v1221
      %vm1654 = vcmask 228352
      %v1655 = vsel %vm1654, %v1622, %v1261
      %v1656 = vsel %vm1654, %v1623, %v1263
      %v1657 = vsel %vm1654, %v1624, %v1265
      %v1658 = vsel %vm1654, %v1625, %v1267
      %v1659 = vsel %vm1654, %v1626, %v1269
      %v1660 = vsel %vm1654, %v1627, %v1271
      %v1661 = vsel %vm1654, %v1628, %v1273
      %v1662 = vsel %vm1654, %v1629, %v1275
      %v1663 = vsel %vm1654, %v1630, %v1277
      %v1664 = vsel %vm1654, %v1631, %v1279
      %v1665 = vsel %vm1654, %v1632, %v1281
      %v1666 = vsel %vm1654, %v1633, %v1283
      %v1667 = vsel %vm1654, %v1634, %v1285
      %v1668 = vsel %vm1654, %v1635, %v1287
      %v1669 = vsel %vm1654, %v1636, %v1289
      %v1670 = vsel %vm1654, %v1637, %v1291
      %v1671 = vsel %vm1654, %v1638, %v1293
      %v1672 = vsel %vm1654, %v1639, %v1295
      %v1673 = vsel %vm1654, %v1640, %v1297
      %v1674 = vsel %vm1654, %v1641, %v1299
      %v1675 = vsel %vm1654, %v1642, %v1301
      %v1676 = vsel %vm1654, %v1643, %v1303
      %v1677 = vsel %vm1654, %v1644, %v1305
      %v1678 = vsel %vm1654, %v1645, %v1307
      %v1679 = vsel %vm1654, %v1646, %v1309
      %v1680 = vsel %vm1654, %v1647, %v1311
      %v1681 = vsel %vm1654, %v1648, %v1313
      %v1682 = vsel %vm1654, %v1649, %v1315
      %v1683 = vsel %vm1654, %v1650, %v1317
      %v1684 = vsel %vm1654, %v1651, %v1319
      %v1685 = vsel %vm1654, %v1652, %v1321
      %v1686 = vsel %vm1654, %v1653, %v1323
      %vm1687 = vcmask 261120
      %v1688 = vsel %vm1687, %v1655, %v1362
      %v1689 = vsel %vm1687, %v1656, %v1364
      %v1690 = vsel %vm1687, %v1657, %v1366
      %v1691 = vsel %vm1687, %v1658, %v1368
      %v1692 = vsel %vm1687, %v1659, %v1370
      %v1693 = vsel %vm1687, %v1660, %v1372
      %v1694 = vsel %vm1687, %v1661, %v1374
      %v1695 = vsel %vm1687, %v1662, %v1376
      %v1696 = vsel %vm1687, %v1663, %v1378
      %v1697 = vsel %vm1687, %v1664, %v1380
      %v1698 = vsel %vm1687, %v1665, %v1382
      %v1699 = vsel %vm1687, %v1666, %v1384
      %v1700 = vsel %vm1687, %v1667, %v1386
      %v1701 = vsel %vm1687, %v1668, %v1388
      %v1702 = vsel %vm1687, %v1669, %v1390
      %v1703 = vsel %vm1687, %v1670, %v1392
      %v1704 = vsel %vm1687, %v1671, %v1394
      %v1705 = vsel %vm1687, %v1672, %v1396
      %v1706 = vsel %vm1687, %v1673, %v1398
      %v1707 = vsel %vm1687, %v1674, %v1400
      %v1708 = vsel %vm1687, %v1675, %v1402
      %v1709 = vsel %vm1687, %v1676, %v1404
      %v1710 = vsel %vm1687, %v1677, %v1406
      %v1711 = vsel %vm1687, %v1678, %v1408
      %v1712 = vsel %vm1687, %v1679, %v1410
      %v1713 = vsel %vm1687, %v1680, %v1412
      %v1714 = vsel %vm1687, %v1681, %v1414
      %v1715 = vsel %vm1687, %v1682, %v1416
      %v1716 = vsel %vm1687, %v1683, %v1418
      %v1717 = vsel %vm1687, %v1684, %v1420
      %v1718 = vsel %vm1687, %v1685, %v1422
      %v1719 = vsel %vm1687, %v1686, %v1424
      %v1720 = vld [vmem:[%s1] sm:$0xff]
      %v1721 = vld [vmem:[%s2] sm:$0xff]
      %1723 = vset.pattern.permute.xlu0 0
      %1724 = vperm.xlu0 %1723, %v1721
      %v1725 = vpop.permute.xlu0 %1724
      %vm1727 = vcmask 293888
      %v1729 = vsel %vm1727, %v1720, 0
      %v1732 = vsel %vm1727, %v1688, 0
      %v1735 = vsel %vm1727, %v1689, 0
      %v1738 = vsel %vm1727, %v1690, 0
      %v1741 = vsel %vm1727, %v1691, 0
      %v1744 = vsel %vm1727, %v1692, 0
      %v1747 = vsel %vm1727, %v1693, 0
      %v1750 = vsel %vm1727, %v1694, 0
      %v1753 = vsel %vm1727, %v1695, 0
      %v1756 = vsel %vm1727, %v1696, 0
      %v1759 = vsel %vm1727, %v1697, 0
      %v1762 = vsel %vm1727, %v1698, 0
      %v1765 = vsel %vm1727, %v1699, 0
      %v1768 = vsel %vm1727, %v1700, 0
      %v1771 = vsel %vm1727, %v1701, 0
      %v1774 = vsel %vm1727, %v1702, 0
      %v1777 = vsel %vm1727, %v1703, 0
      %v1780 = vsel %vm1727, %v1704, 0
      %v1783 = vsel %vm1727, %v1705, 0
      %v1786 = vsel %vm1727, %v1706, 0
      %v1789 = vsel %vm1727, %v1707, 0
      %v1792 = vsel %vm1727, %v1708, 0
      %v1795 = vsel %vm1727, %v1709, 0
      %v1798 = vsel %vm1727, %v1710, 0
      %v1801 = vsel %vm1727, %v1711, 0
      %v1804 = vsel %vm1727, %v1712, 0
      %v1807 = vsel %vm1727, %v1713, 0
      %v1810 = vsel %vm1727, %v1714, 0
      %v1813 = vsel %vm1727, %v1715, 0
      %v1816 = vsel %vm1727, %v1716, 0
      %v1819 = vsel %vm1727, %v1717, 0
      %v1822 = vsel %vm1727, %v1718, 0
      %v1825 = vsel %vm1727, %v1719, 0
      %1827 = vmatprep.subr.mxu0 0.0
      %1828 = vmatpush1.xpose.msra.mxu0 %v1777
      %1829 = vmatprep.subr.mxu0 0.0
      %1830 = vmatpush1.xpose.msra.mxu0 %v1774
      %1831 = vmatprep.subr.mxu0 0.0
      %1832 = vmatpush1.xpose.msra.mxu0 %v1771
      %1833 = vmatprep.subr.mxu0 0.0
      %1834 = vmatpush1.xpose.msra.mxu0 %v1768
      %1835 = vmatprep.subr.mxu0 0.0
      %1836 = vmatpush1.xpose.msra.mxu0 %v1765
      %1837 = vmatprep.subr.mxu0 0.0
      %1838 = vmatpush1.xpose.msra.mxu0 %v1762
      %1839 = vmatprep.subr.mxu0 0.0
      %1840 = vmatpush1.xpose.msra.mxu0 %v1759
      %1841 = vmatprep.subr.mxu0 0.0
      %1842 = vmatpush1.xpose.msra.mxu0 %v1756
      %1843 = vmatprep.subr.mxu0 0.0
      %1844 = vmatpush1.xpose.msra.mxu0 %v1753
      %1845 = vmatprep.subr.mxu0 0.0
      %1846 = vmatpush1.xpose.msra.mxu0 %v1750
      %1847 = vmatprep.subr.mxu0 0.0
      %1848 = vmatpush1.xpose.msra.mxu0 %v1747
      %1849 = vmatprep.subr.mxu0 0.0
      %1850 = vmatpush1.xpose.msra.mxu0 %v1744
      %1851 = vmatprep.subr.mxu0 0.0
      %1852 = vmatpush1.xpose.msra.mxu0 %v1741
      %1853 = vmatprep.subr.mxu0 0.0
      %1854 = vmatpush1.xpose.msra.mxu0 %v1738
      %1855 = vmatprep.subr.mxu0 0.0
      %1856 = vmatpush1.xpose.msra.mxu0 %v1735
      %1857 = vmatprep.subr.mxu0 0.0
      %1858 = vmatpush1.xpose.msra.mxu0 %v1732
      %1859 = vmatprep.subr.mxu0 0.0
      %1860 = vmatpush2.xpose.msra.mxu0 %v1825
      %1861 = vmatprep.subr.mxu0 0.0
      %1862 = vmatpush2.xpose.msra.mxu0 %v1822
      %1863 = vmatprep.subr.mxu0 0.0
      %1864 = vmatpush2.xpose.msra.mxu0 %v1819
      %1865 = vmatprep.subr.mxu0 0.0
      %1866 = vmatpush2.xpose.msra.mxu0 %v1816
      %1867 = vmatprep.subr.mxu0 0.0
      %1868 = vmatpush2.xpose.msra.mxu0 %v1813
      %1869 = vmatprep.subr.mxu0 0.0
      %1870 = vmatpush2.xpose.msra.mxu0 %v1810
      %1871 = vmatprep.subr.mxu0 0.0
      %1872 = vmatpush2.xpose.msra.mxu0 %v1807
      %1873 = vmatprep.subr.mxu0 0.0
      %1874 = vmatpush2.xpose.msra.mxu0 %v1804
      %1875 = vmatprep.subr.mxu0 0.0
      %1876 = vmatpush2.xpose.msra.mxu0 %v1801
      %1877 = vmatprep.subr.mxu0 0.0
      %1878 = vmatpush2.xpose.msra.mxu0 %v1798
      %1879 = vmatprep.subr.mxu0 0.0
      %1880 = vmatpush2.xpose.msra.mxu0 %v1795
      %1881 = vmatprep.subr.mxu0 0.0
      %1882 = vmatpush2.xpose.msra.mxu0 %v1792
      %1883 = vmatprep.subr.mxu0 0.0
      %1884 = vmatpush2.xpose.msra.mxu0 %v1789
      %1885 = vmatprep.subr.mxu0 0.0
      %1886 = vmatpush2.xpose.msra.mxu0 %v1786
      %1887 = vmatprep.subr.mxu0 0.0
      %1888 = vmatpush2.xpose.msra.mxu0 %v1783
      %1889 = vmatprep.subr.mxu0 0.0
      %1890 = vmatpush2.xpose.msra.mxu0 %v1780
      %1891 = vmatprep.mubr.f32.mxu0 0.0
      %1892 = vmatmul.mubr.f32.gmra.mxu0 %v1729
      %v1893 = vpop.f32.mrf.mxu0
      %v1894 = vadd.f32 %v1725, %v1893
      %v1895 = vpop.f32.mrf.mxu0
      %v1896 = vadd.f32 %v1725, %v1895
      %1897 = vdwg.mxu0
      %v1898 = vadd.f32 %v1894, %v1896
      %1899 = vadd.xlane.f32.xlu0 %v1898
      %v1900 = vpop.xlane.xlu0 %1899
      %vm1901 = vcmask 7168
      %1902 = vst.msk [vmem:[%s241] sm:$0xff] %vm1901, %v1900
      %v1903 = vmul.f32 %v1894, %v1894
      %v1904 = vmul.f32 %v1896, %v1896
      %v1905 = vadd.f32 %v1903, %v1904
      %1906 = vadd.xlane.f32.xlu0 %v1905
      %v1907 = vpop.xlane.xlu0 %1906
      %1908 = vst.msk [vmem:[%s245] sm:$0xff] %vm1901, %v1907
      %1909 = vst [vmem:[%s237] sm:$0xff] %v1894
      %1910 = vst [vmem:[%s237 + $0x8] sm:$0xff] %v1896
      %p1911 = scmp.lt.s32.totalorder %s17, 1
      %s1912 = scalar_select %p1911, %s17, 1
      %s1913 = smul.addr %s1912, 2
      %s1914 = smul.addr %s1913, 8
      %s1915 = scalar_lea.vmem %s3, %s1914
      %p1916 = scmp.lt.s32.totalorder %s17, 1
      %s1917 = scalar_select %p1916, %s17, 1
      %s1918 = smul.addr %s1917, 8
      %s1919 = scalar_lea.vmem %s4, %s1918
      %p1920 = scmp.lt.s32.totalorder %s17, 1
      %s1921 = scalar_select %p1920, %s17, 1
      %s1922 = smul.addr %s1921, 8
      %s1923 = scalar_lea.vmem %s5, %s1922
      // Predicated region
      $region33: #{sepconv_forward.2} parent=31 // pred_check
        %p1924 = pneg %p103
      $region34: #{sepconv_forward.2} parent=31 // pred_check_branch
        %1926 = sbr.rel (%p1924) target = $region36
      $region35: #{sepconv_forward.2} parent=31 // pred_region
        _
      $region36: #{sepconv_forward.2} parent=31 // pred_fallthru
        _
      // Predicated region
      $region37: #{sepconv_forward.2} parent=31 // pred_check
        %p1927 = pneg %p129
      $region38: #{sepconv_forward.2} parent=31 // pred_check_branch
        %1929 = sbr.rel (%p1927) target = $region40
      $region39: #{sepconv_forward.2} parent=31 // pred_region
        _
      $region40: #{sepconv_forward.2} parent=31 // pred_fallthru
        _
      // Predicated region
      $region41: #{sepconv_forward.2} parent=31 // pred_check
        %p1930 = pneg %p155
      $region42: #{sepconv_forward.2} parent=31 // pred_check_branch
        %1932 = sbr.rel (%p1930) target = $region44
      $region43: #{sepconv_forward.2} parent=31 // pred_region
        _
      $region44: #{sepconv_forward.2} parent=31 // pred_fallthru
        _
    $region32: #{sepconv_forward.2} parent=5 // pred_fallthru
      _
    %p1933 = scmp.le.s32.totalorder 2, %s12
    // Predicated region
    $region45: #{sepconv_forward.2} parent=5 // pred_check
      %p1934 = pneg %p1933
    $region46: #{sepconv_forward.2} parent=5 // pred_check_branch
      %1936 = sbr.rel (%p1934) target = $region48
    $region47: #{sepconv_forward.2} parent=5 // pred_region
      %s1937 = ssub.s32 %s12, 2
      // Predicated region
      $region49: #{sepconv_forward.2} parent=47 // pred_check
        %p1938 = pneg %p109
      $region50: #{sepconv_forward.2} parent=47 // pred_check_branch
        %1940 = sbr.rel (%p1938) target = $region52
      $region51: #{sepconv_forward.2} parent=47 // pred_region
        %p1941 = scmp.lt.s32.totalorder %s18, 1
        %s1942 = scalar_select %p1941, %s18, 1
        %s1943 = smul.addr %s1942, 2
        %s1944 = smul.addr %s1943, 8
        %s1945 = scalar_lea.vmem %s3, %s1944
      $region52: #{sepconv_forward.2} parent=47 // pred_fallthru
        _
      // Predicated region
      $region53: #{sepconv_forward.2} parent=47 // pred_check
        %p1946 = pneg %p135
      $region54: #{sepconv_forward.2} parent=47 // pred_check_branch
        %1948 = sbr.rel (%p1946) target = $region56
      $region55: #{sepconv_forward.2} parent=47 // pred_region
        %p1949 = scmp.lt.s32.totalorder %s18, 1
        %s1950 = scalar_select %p1949, %s18, 1
        %s1951 = smul.addr %s1950, 8
        %s1952 = scalar_lea.vmem %s4, %s1951
      $region56: #{sepconv_forward.2} parent=47 // pred_fallthru
        _
      // Predicated region
      $region57: #{sepconv_forward.2} parent=47 // pred_check
        %p1953 = pneg %p161
      $region58: #{sepconv_forward.2} parent=47 // pred_check_branch
        %1955 = sbr.rel (%p1953) target = $region60
      $region59: #{sepconv_forward.2} parent=47 // pred_region
        %p1956 = scmp.lt.s32.totalorder %s18, 1
        %s1957 = scalar_select %p1956, %s18, 1
        %s1958 = smul.addr %s1957, 8
        %s1959 = scalar_lea.vmem %s5, %s1958
      $region60: #{sepconv_forward.2} parent=47 // pred_fallthru
        _
    $region48: #{sepconv_forward.2} parent=5 // pred_fallthru
      _
  $region6: #{sepconv_forward.2} parent=0 // loop_footer
    %s16 = sadd.s32 1, %s12
  $region7: #{sepconv_forward.2} parent=0 // loop_footer_branch
    %11 = sbr.rel target = $region3
  $region8: #{sepconv_forward.2} parent=0 // loop_exit
    _

</llo_original>
